<compile_context>
chip_gen: v7x
topology: tpu7x:2x2x1
jax: 0.10.0
libtpu: 0.0.40
codegen_flags: <defaults>
</compile_context>

<pallas_src>
import jax
import jax.numpy as jnp
from jax import lax
from jax.experimental import pallas as pl
from jax.experimental.pallas import tpu as pltpu

# ---------------- configuration ----------------
B = 2
N_CHANNELS = 64
N_HEADS = 4
HEAD_DIM = N_CHANNELS // N_HEADS          # 16
H = W = 4
S = H * W                                 # 16 == HEAD_DIM (required by grayscale branch)
BS = B * S                                # 32 tokens total
N_GROUPS = 4 if N_CHANNELS <= 64 else 8   # GroupNorm groups
CG = N_CHANNELS // N_GROUPS               # channels per group
EPS = 1e-5
SCALE = HEAD_DIM ** (-0.5)
EDGE_WEIGHT = 1.5                         # is_grayscale == True path
NEG_BIG = -1e30
OUT_LANES = 128                           # lane-dense kernel output width

assert S == HEAD_DIM, "grayscale branch requires seq_len == head_dim (PyTorch broadcast)"


# ---------------- Pallas kernel ----------------
def self_attention_kernel(xcat_ref, bavg_ref, gavg2_ref, gnw_ref, gnb_ref,
                          wqkv_ref, bqkv_ref, mask_ref, hmask_ref,
                          wo_ref, bo_ref, o_ref):
    C = N_CHANNELS
    D = HEAD_DIM
    f32 = jnp.float32
    bf16 = jnp.bfloat16

    # ---- GroupNorm, fused lane-dense moments: two f32 matmuls on [x | x^2] ----
    xcat = xcat_ref[...]                                            # (BS, 2C)
    mom = jnp.dot(jnp.dot(bavg_ref[...], xcat, preferred_element_type=f32),
                  gavg2_ref[...], preferred_element_type=f32)       # (BS, 2C)
    mean = mom[:, :C]                                               # E[x]  per (b, group)
    ex2 = mom[:, C:]                                                # E[x^2]
    x = xcat[:, :C]
    xn = (x - mean) * lax.rsqrt(ex2 - mean * mean + EPS) * gnw_ref[...] + gnb_ref[...]

    # ---- fused QKV projection (bf16 MXU operands, f32 accumulation) ----
    qkv = jnp.dot(xn.astype(bf16), wqkv_ref[...],
                  preferred_element_type=f32) + bqkv_ref[...]       # (BS, 3C) f32

    # ---- head-batched q / transposed k ----
    # q3[h, i, d] = q[b, h, s, d]  (i = b*S + s): 4 cheap static lane slices + stack.
    q3 = jnp.stack([qkv[:, h * D:(h + 1) * D] for h in range(N_HEADS)], axis=0)  # (H, BS, D)
    # the single full k transpose (BS, C) -> (C, BS), then sublane-aligned row slices
    kT = qkv[:, C:2 * C].T                                                        # (C, BS)
    k3 = jnp.stack([kT[h * D:(h + 1) * D, :] for h in range(N_HEADS)], axis=0)    # (H, D, BS)

    # ---- scores: ONE batched matmul over all heads ----
    scores = jnp.einsum('hid,hdj->hij', q3.astype(bf16), k3.astype(bf16),
                        preferred_element_type=f32)                               # (H, BS, BS)

    # grayscale edge term |q - k^T| (valid since S == HEAD_DIM), f32 on the VPU;
    # jnp.tile expands both operands to (H, BS, BS) without per-head transposes.
    edge = jnp.abs(jnp.tile(q3, (1, 1, BS // D)) - jnp.tile(k3, (1, BS // D, 1)))  # (H, BS, BS)

    # cross-batch token pairs get a large negative bias so one softmax covers everything
    logits = scores * SCALE + EDGE_WEIGHT * edge + mask_ref[...]

    # ---- single softmax over the whole (H, BS, BS) slab ----
    m = jnp.max(logits, axis=-1, keepdims=True)
    e = jnp.exp(logits - m)
    p = e * pl.reciprocal(jnp.sum(e, axis=-1, keepdims=True), approx=True)

    # dropout: eval-mode identity
    # TODO(synk): training-mode nn.Dropout(0.1) mask not implemented (stochastic op).

    # ---- PV with head-masked value expansion: head recombination is a sum over h,
    # no concatenates / per-head relayouts; masked p zeros the cross-batch columns.
    v_exp = qkv[:, 2 * C:].astype(bf16)[None, :, :] * hmask_ref[...][:, None, :]   # (H, BS, C)
    ctx = jnp.einsum('hij,hjc->hic', p.astype(bf16), v_exp,
                     preferred_element_type=f32)                                   # (H, BS, C)
    attn_out = jnp.sum(ctx, axis=0)                                                # (BS, C)

    # ---- output projection (zero-padded to 128 lanes -> lane-dense store) + clamp
    out = jnp.dot(attn_out.astype(bf16), wo_ref[...],
                  preferred_element_type=f32) + bo_ref[...]                        # (BS, 128)
    o_ref[...] = jnp.clip(out, -1.0, 1.0)


# ---------------- wrapper ----------------
def self_attention(x, params):
    """x: (B, C, H, W) float32 (NCHW, like PyTorch)."""
    Bn, C, Hh, Ww = x.shape
    Sn = Hh * Ww
    Cg = C // N_GROUPS
    D = C // N_HEADS
    gnw, gnb, wq, bq, wk, bk, wv, bv, wo, bo = params

    # token-major flat input (B*S, C); all NCHW <-> token layout moves stay in XLA.
    x2d = jnp.transpose(x.reshape(Bn, C, Sn), (0, 2, 1)).reshape(Bn * Sn, C)
    # lane-dense [x | x^2] slab for the fused GroupNorm moment matmuls
    xcat = jnp.concatenate([x2d, x2d * x2d], axis=1)                          # (BS, 2C)

    # constant averaging matrices for the vectorized GroupNorm
    bidx = jnp.arange(Bn * Sn) // Sn
    bavg = (bidx[:, None] == bidx[None, :]).astype(jnp.float32) / Sn          # (BS, BS)
    gkey = jnp.arange(2 * C) // Cg
    gavg2 = (gkey[:, None] == gkey[None, :]).astype(jnp.float32) / Cg         # (2C, 2C) blockdiag

    # additive mask: large negative for cross-batch token pairs (shared by all heads)
    mask = jnp.where(bidx[:, None] == bidx[None, :], 0.0, NEG_BIG).astype(jnp.float32)

    # head-selection mask for the value expansion
    hidx = jnp.arange(C) // D
    hmask = (jnp.arange(N_HEADS)[:, None] == hidx[None, :]).astype(jnp.bfloat16)  # (H, C)

    # fused QKV weights, pre-transposed to (C_in, 3C_out); bf16 for the MXU
    wqkv = jnp.concatenate([wq.T, wk.T, wv.T], axis=1).astype(jnp.bfloat16)   # (C, 3C)
    bqkv = jnp.concatenate([bq, bk, bv]).reshape(1, 3 * C)

    # out-proj zero-padded to 128 output lanes -> lane-dense kernel store
    wo_pad = jnp.concatenate(
        [wo.T, jnp.zeros((C, OUT_LANES - C), wo.dtype)], axis=1).astype(jnp.bfloat16)
    bo_pad = jnp.concatenate([bo, jnp.zeros((OUT_LANES - C,), bo.dtype)]).reshape(1, OUT_LANES)

    args = (xcat, bavg, gavg2,
            gnw.reshape(1, C), gnb.reshape(1, C),
            wqkv, bqkv, mask, hmask, wo_pad, bo_pad)

    out2d = pl.pallas_call(
        self_attention_kernel,
        out_shape=jax.ShapeDtypeStruct((Bn * Sn, OUT_LANES), jnp.float32),
        in_specs=[pl.BlockSpec(memory_space=pltpu.MemorySpace.VMEM) for _ in args],
        out_specs=pl.BlockSpec(memory_space=pltpu.MemorySpace.VMEM),
    )(*args)[:, :C]

    # back to NCHW with plain XLA
    return jnp.transpose(out2d.reshape(Bn, Sn, C), (0, 2, 1)).reshape(Bn, C, Hh, Ww)


# ---------------- pure-JAX reference (for correctness check) ----------------
def reference(x, params):
    gnw, gnb, wq, bq, wk, bk, wv, bv, wo, bo = params
    Bn, C, Hh, Ww = x.shape
    Sn = Hh * Ww
    x = x.reshape(Bn, C, Sn)
    G, Cg = N_GROUPS, C // N_GROUPS
    xg = x.reshape(Bn, G, Cg * Sn)
    mean = xg.mean(-1, keepdims=True)
    var = ((xg - mean) ** 2).mean(-1, keepdims=True)
    xn = ((xg - mean) / jnp.sqrt(var + EPS)).reshape(Bn, C, Sn)
    xn = gnw[None, :, None] * xn + gnb[None, :, None]
    xt = jnp.transpose(xn, (0, 2, 1))              # (B, S, C)
    q = xt @ wq.T + bq
    k = xt @ wk.T + bk
    v = xt @ wv.T + bv

    def heads(a):
        return jnp.transpose(a.reshape(Bn, Sn, N_HEADS, HEAD_DIM), (0, 2, 1, 3))

    q, k, v = heads(q), heads(k), heads(v)
    attn = jnp.einsum('bhid,bhjd->bhij', q, k) * SCALE
    kt = jnp.transpose(k, (0, 1, 3, 2))
    attn = attn + EDGE_WEIGHT * jnp.abs(q - kt)    # requires S == D
    attn = jax.nn.softmax(attn, axis=-1)
    out = jnp.einsum('bhij,bhjd->bhid', attn, v)
    out = jnp.transpose(out, (0, 2, 1, 3)).reshape(Bn, Sn, C)
    out = jnp.clip(out @ wo.T + bo, -1.0, 1.0)
    return jnp.transpose(out, (0, 2, 1)).reshape(Bn, C, Hh, Ww)


# ---------------- main ----------------
if __name__ == "__main__":
    key = jax.random.PRNGKey(0)
    keys = jax.random.split(key, 11)
    C = N_CHANNELS

    x = jax.random.normal(keys[0], (B, C, H, W), dtype=jnp.float32)

    def lin_w(k):
        return 0.05 * jax.random.normal(k, (C, C), dtype=jnp.float32)

    def lin_b(k):
        return 0.05 * jax.random.normal(k, (C,), dtype=jnp.float32)

    params = (
        1.0 + 0.1 * jax.random.normal(keys[1], (C,), dtype=jnp.float32),  # gn weight
        0.1 * jax.random.normal(keys[2], (C,), dtype=jnp.float32),        # gn bias
        lin_w(keys[3]), lin_b(keys[4]),    # q_proj
        lin_w(keys[5]), lin_b(keys[6]),    # k_proj
        lin_w(keys[7]), lin_b(keys[8]),    # v_proj
        lin_w(keys[9]), lin_b(keys[10]),   # out_proj
    )

    out = self_attention(x, params)
    out = jax.block_until_ready(out)

    ref = jax.block_until_ready(reference(x, params))
    max_err = float(jnp.max(jnp.abs(out - ref)))
    assert out.shape == (B, C, H, W)
    assert max_err < 5e-2, f"mismatch vs reference: {max_err}"

    print("KERNEL_OK")
</pallas_src>

<mosaic_0001>
module attributes {stable_mosaic.version = 11 : i64} {
  func.func @self_attention_kernel(%arg0: memref<32x128xf32, #tpu.memory_space<vmem>>, %arg1: memref<32x32xf32, #tpu.memory_space<vmem>>, %arg2: memref<128x128xf32, #tpu.memory_space<vmem>>, %arg3: memref<1x64xf32, #tpu.memory_space<vmem>>, %arg4: memref<1x64xf32, #tpu.memory_space<vmem>>, %arg5: memref<64x192xbf16, #tpu.memory_space<vmem>>, %arg6: memref<1x192xf32, #tpu.memory_space<vmem>>, %arg7: memref<32x32xf32, #tpu.memory_space<vmem>>, %arg8: memref<4x64xbf16, #tpu.memory_space<vmem>>, %arg9: memref<64x128xbf16, #tpu.memory_space<vmem>>, %arg10: memref<1x128xf32, #tpu.memory_space<vmem>>, %arg11: memref<32x128xf32, #tpu.memory_space<vmem>>) attributes {dimension_semantics = [], scalar_prefetch = 0 : i64, scratch_operands = 0 : i64, tpu.core_type = #tpu.core_type<tc>} {
    %c0 = arith.constant 0 : index
    %c0_0 = arith.constant 0 : index
    %0 = vector.load %arg0[%c0, %c0_0] : memref<32x128xf32, #tpu.memory_space<vmem>>, vector<32x128xf32>
    %c0_1 = arith.constant 0 : index
    %c0_2 = arith.constant 0 : index
    %1 = vector.load %arg1[%c0_1, %c0_2] : memref<32x32xf32, #tpu.memory_space<vmem>>, vector<32x32xf32>
    %cst = arith.constant dense<0.000000e+00> : vector<32x128xf32>
    %2 = tpu.matmul %1, %0, %cst {dimension_numbers = #tpu.dot_dimension_numbers<[1], [0], [0], [1], [0, 0, 1, 1], [], []>} : vector<32x32xf32>, vector<32x128xf32>, vector<32x128xf32> -> vector<32x128xf32>
    %c0_3 = arith.constant 0 : index
    %c0_4 = arith.constant 0 : index
    %3 = vector.load %arg2[%c0_3, %c0_4] : memref<128x128xf32, #tpu.memory_space<vmem>>, vector<128x128xf32>
    %cst_5 = arith.constant dense<0.000000e+00> : vector<32x128xf32>
    %4 = tpu.matmul %2, %3, %cst_5 {dimension_numbers = #tpu.dot_dimension_numbers<[1], [0], [0], [1], [0, 0, 1, 1], [], []>} : vector<32x128xf32>, vector<128x128xf32>, vector<32x128xf32> -> vector<32x128xf32>
    %5 = vector.extract_strided_slice %4 {offsets = [0, 0], sizes = [32, 64], strides = [1, 1]} : vector<32x128xf32> to vector<32x64xf32>
    %6 = vector.extract_strided_slice %4 {offsets = [0, 64], sizes = [32, 64], strides = [1, 1]} : vector<32x128xf32> to vector<32x64xf32>
    %7 = vector.extract_strided_slice %0 {offsets = [0, 0], sizes = [32, 64], strides = [1, 1]} : vector<32x128xf32> to vector<32x64xf32>
    %8 = arith.subf %7, %5 : vector<32x64xf32>
    %9 = arith.mulf %5, %5 : vector<32x64xf32>
    %10 = arith.subf %6, %9 : vector<32x64xf32>
    %cst_6 = arith.constant 9.99999974E-6 : f32
    %11 = vector.broadcast %cst_6 : f32 to vector<32x64xf32>
    %12 = arith.addf %10, %11 : vector<32x64xf32>
    %13 = math.rsqrt %12 : vector<32x64xf32>
    %14 = arith.mulf %8, %13 : vector<32x64xf32>
    %c0_7 = arith.constant 0 : index
    %c0_8 = arith.constant 0 : index
    %15 = vector.load %arg3[%c0_7, %c0_8] : memref<1x64xf32, #tpu.memory_space<vmem>>, vector<1x64xf32>
    %16 = vector.broadcast %15 : vector<1x64xf32> to vector<32x64xf32>
    %17 = arith.mulf %14, %16 : vector<32x64xf32>
    %c0_9 = arith.constant 0 : index
    %c0_10 = arith.constant 0 : index
    %18 = vector.load %arg4[%c0_9, %c0_10] : memref<1x64xf32, #tpu.memory_space<vmem>>, vector<1x64xf32>
    %19 = vector.broadcast %18 : vector<1x64xf32> to vector<32x64xf32>
    %20 = arith.addf %17, %19 : vector<32x64xf32>
    %21 = arith.truncf %20 : vector<32x64xf32> to vector<32x64xbf16>
    %c0_11 = arith.constant 0 : index
    %c0_12 = arith.constant 0 : index
    %22 = vector.load %arg5[%c0_11, %c0_12] : memref<64x192xbf16, #tpu.memory_space<vmem>>, vector<64x192xbf16>
    %cst_13 = arith.constant dense<0.000000e+00> : vector<32x192xf32>
    %23 = tpu.matmul %21, %22, %cst_13 {dimension_numbers = #tpu.dot_dimension_numbers<[1], [0], [0], [1], [0, 0, 1, 1], [], []>} : vector<32x64xbf16>, vector<64x192xbf16>, vector<32x192xf32> -> vector<32x192xf32>
    %c0_14 = arith.constant 0 : index
    %c0_15 = arith.constant 0 : index
    %24 = vector.load %arg6[%c0_14, %c0_15] : memref<1x192xf32, #tpu.memory_space<vmem>>, vector<1x192xf32>
    %25 = vector.broadcast %24 : vector<1x192xf32> to vector<32x192xf32>
    %26 = arith.addf %23, %25 : vector<32x192xf32>
    %27 = vector.extract_strided_slice %26 {offsets = [0, 0], sizes = [32, 16], strides = [1, 1]} : vector<32x192xf32> to vector<32x16xf32>
    %28 = vector.extract_strided_slice %26 {offsets = [0, 16], sizes = [32, 16], strides = [1, 1]} : vector<32x192xf32> to vector<32x16xf32>
    %29 = vector.extract_strided_slice %26 {offsets = [0, 32], sizes = [32, 16], strides = [1, 1]} : vector<32x192xf32> to vector<32x16xf32>
    %30 = vector.extract_strided_slice %26 {offsets = [0, 48], sizes = [32, 16], strides = [1, 1]} : vector<32x192xf32> to vector<32x16xf32>
    %31 = vector.shape_cast %27 : vector<32x16xf32> to vector<1x32x16xf32>
    %32 = vector.shape_cast %28 : vector<32x16xf32> to vector<1x32x16xf32>
    %33 = vector.shape_cast %29 : vector<32x16xf32> to vector<1x32x16xf32>
    %34 = vector.shape_cast %30 : vector<32x16xf32> to vector<1x32x16xf32>
    %35 = tpu.concatenate %31, %32, %33, %34 in 0 : vector<1x32x16xf32>, vector<1x32x16xf32>, vector<1x32x16xf32>, vector<1x32x16xf32> -> vector<4x32x16xf32>
    %36 = vector.extract_strided_slice %26 {offsets = [0, 64], sizes = [32, 64], strides = [1, 1]} : vector<32x192xf32> to vector<32x64xf32>
    %37 = tpu.transpose %36, [1, 0] : vector<32x64xf32> -> vector<64x32xf32>
    %38 = vector.extract_strided_slice %37 {offsets = [0, 0], sizes = [16, 32], strides = [1, 1]} : vector<64x32xf32> to vector<16x32xf32>
    %39 = vector.extract_strided_slice %37 {offsets = [16, 0], sizes = [16, 32], strides = [1, 1]} : vector<64x32xf32> to vector<16x32xf32>
    %40 = vector.extract_strided_slice %37 {offsets = [32, 0], sizes = [16, 32], strides = [1, 1]} : vector<64x32xf32> to vector<16x32xf32>
    %41 = vector.extract_strided_slice %37 {offsets = [48, 0], sizes = [16, 32], strides = [1, 1]} : vector<64x32xf32> to vector<16x32xf32>
    %42 = vector.shape_cast %38 : vector<16x32xf32> to vector<1x16x32xf32>
    %43 = vector.shape_cast %39 : vector<16x32xf32> to vector<1x16x32xf32>
    %44 = vector.shape_cast %40 : vector<16x32xf32> to vector<1x16x32xf32>
    %45 = vector.shape_cast %41 : vector<16x32xf32> to vector<1x16x32xf32>
    %46 = tpu.concatenate %42, %43, %44, %45 in 0 : vector<1x16x32xf32>, vector<1x16x32xf32>, vector<1x16x32xf32>, vector<1x16x32xf32> -> vector<4x16x32xf32>
    %47 = arith.truncf %35 : vector<4x32x16xf32> to vector<4x32x16xbf16>
    %48 = arith.truncf %46 : vector<4x16x32xf32> to vector<4x16x32xbf16>
    "tpu.trace_start"() <{level = 10 : i32, message = "hid,hdj->hij"}> : () -> ()
    %cst_16 = arith.constant dense<0.000000e+00> : vector<4x32x32xf32>
    %49 = tpu.matmul %47, %48, %cst_16 {dimension_numbers = #tpu.dot_dimension_numbers<[2], [1], [1], [2], [0, 0, 0, 1, 1, 2], [0], [0]>} : vector<4x32x16xbf16>, vector<4x16x32xbf16>, vector<4x32x32xf32> -> vector<4x32x32xf32>
    "tpu.trace_stop"() : () -> ()
    %50 = tpu.concatenate %35, %35 in 2 : vector<4x32x16xf32>, vector<4x32x16xf32> -> vector<4x32x32xf32>
    %51 = tpu.concatenate %46, %46 in 1 : vector<4x16x32xf32>, vector<4x16x32xf32> -> vector<4x32x32xf32>
    %52 = arith.subf %50, %51 : vector<4x32x32xf32>
    %53 = math.absf %52 : vector<4x32x32xf32>
    %cst_17 = arith.constant 2.500000e-01 : f32
    %54 = vector.broadcast %cst_17 : f32 to vector<4x32x32xf32>
    %55 = arith.mulf %49, %54 : vector<4x32x32xf32>
    %cst_18 = arith.constant 1.500000e+00 : f32
    %56 = vector.broadcast %cst_18 : f32 to vector<4x32x32xf32>
    %57 = arith.mulf %56, %53 : vector<4x32x32xf32>
    %58 = arith.addf %55, %57 : vector<4x32x32xf32>
    %c0_19 = arith.constant 0 : index
    %c0_20 = arith.constant 0 : index
    %59 = vector.load %arg7[%c0_19, %c0_20] : memref<32x32xf32, #tpu.memory_space<vmem>>, vector<32x32xf32>
    %60 = vector.shape_cast %59 : vector<32x32xf32> to vector<1x32x32xf32>
    %61 = vector.broadcast %60 : vector<1x32x32xf32> to vector<4x32x32xf32>
    %62 = arith.addf %58, %61 : vector<4x32x32xf32>
    %cst_21 = arith.constant dense<0xFF800000> : vector<4x32xf32>
    %63 = vector.multi_reduction <maximumf>, %62, %cst_21 [2] : vector<4x32x32xf32> to vector<4x32xf32>
    %64 = vector.shape_cast %63 : vector<4x32xf32> to vector<4x32x1xf32>
    %65 = vector.broadcast %64 : vector<4x32x1xf32> to vector<4x32x32xf32>
    %66 = arith.subf %62, %65 : vector<4x32x32xf32>
    %67 = math.exp %66 : vector<4x32x32xf32>
    %cst_22 = arith.constant dense<0.000000e+00> : vector<4x32xf32>
    %68 = vector.multi_reduction <add>, %67, %cst_22 [2] : vector<4x32x32xf32> to vector<4x32xf32>
    %69 = vector.shape_cast %68 : vector<4x32xf32> to vector<4x32x1xf32>
    %70 = tpu.reciprocal %69 {approx = true} : vector<4x32x1xf32> -> vector<4x32x1xf32>
    %71 = vector.broadcast %70 : vector<4x32x1xf32> to vector<4x32x32xf32>
    %72 = arith.mulf %67, %71 : vector<4x32x32xf32>
    %73 = vector.extract_strided_slice %26 {offsets = [0, 128], sizes = [32, 64], strides = [1, 1]} : vector<32x192xf32> to vector<32x64xf32>
    %74 = arith.truncf %73 : vector<32x64xf32> to vector<32x64xbf16>
    %75 = vector.shape_cast %74 : vector<32x64xbf16> to vector<1x32x64xbf16>
    %c0_23 = arith.constant 0 : index
    %c0_24 = arith.constant 0 : index
    %76 = vector.load %arg8[%c0_23, %c0_24] : memref<4x64xbf16, #tpu.memory_space<vmem>>, vector<4x64xbf16>
    %77 = vector.shape_cast %76 : vector<4x64xbf16> to vector<4x1x64xbf16>
    %78 = vector.broadcast %75 : vector<1x32x64xbf16> to vector<4x32x64xbf16>
    %79 = vector.broadcast %77 : vector<4x1x64xbf16> to vector<4x32x64xbf16>
    %80 = arith.mulf %78, %79 : vector<4x32x64xbf16>
    %81 = arith.truncf %72 : vector<4x32x32xf32> to vector<4x32x32xbf16>
    "tpu.trace_start"() <{level = 10 : i32, message = "hij,hjc->hic"}> : () -> ()
    %cst_25 = arith.constant dense<0.000000e+00> : vector<4x32x64xf32>
    %82 = tpu.matmul %81, %80, %cst_25 {dimension_numbers = #tpu.dot_dimension_numbers<[2], [1], [1], [2], [0, 0, 0, 1, 1, 2], [0], [0]>} : vector<4x32x32xbf16>, vector<4x32x64xbf16>, vector<4x32x64xf32> -> vector<4x32x64xf32>
    "tpu.trace_stop"() : () -> ()
    %cst_26 = arith.constant dense<0.000000e+00> : vector<32x64xf32>
    %83 = vector.multi_reduction <add>, %82, %cst_26 [0] : vector<4x32x64xf32> to vector<32x64xf32>
    %84 = arith.truncf %83 : vector<32x64xf32> to vector<32x64xbf16>
    %c0_27 = arith.constant 0 : index
    %c0_28 = arith.constant 0 : index
    %85 = vector.load %arg9[%c0_27, %c0_28] : memref<64x128xbf16, #tpu.memory_space<vmem>>, vector<64x128xbf16>
    %cst_29 = arith.constant dense<0.000000e+00> : vector<32x128xf32>
    %86 = tpu.matmul %84, %85, %cst_29 {dimension_numbers = #tpu.dot_dimension_numbers<[1], [0], [0], [1], [0, 0, 1, 1], [], []>} : vector<32x64xbf16>, vector<64x128xbf16>, vector<32x128xf32> -> vector<32x128xf32>
    %c0_30 = arith.constant 0 : index
    %c0_31 = arith.constant 0 : index
    %87 = vector.load %arg10[%c0_30, %c0_31] : memref<1x128xf32, #tpu.memory_space<vmem>>, vector<1x128xf32>
    %88 = vector.broadcast %87 : vector<1x128xf32> to vector<32x128xf32>
    %89 = arith.addf %86, %88 : vector<32x128xf32>
    %cst_32 = arith.constant -1.000000e+00 : f32
    %cst_33 = arith.constant 1.000000e+00 : f32
    %90 = vector.broadcast %cst_32 : f32 to vector<32x128xf32>
    %91 = arith.maximumf %90, %89 : vector<32x128xf32>
    %92 = vector.broadcast %cst_33 : f32 to vector<32x128xf32>
    %93 = arith.minimumf %92, %91 : vector<32x128xf32>
    %c0_34 = arith.constant 0 : index
    %c0_35 = arith.constant 0 : index
    %94 = vector.load %arg11[%c0_34, %c0_35] : memref<32x128xf32, #tpu.memory_space<vmem>>, vector<32x128xf32>
    tpu.vector_store %arg11[%c0_34, %c0_35], %93 {strides = array<i32>} : memref<32x128xf32, #tpu.memory_space<vmem>>, vector<32x128xf32>,
    return
  }
}

</mosaic_0001>

<llo_original>
// kernel: tpu_custom_call.1
$region0: #{tpu_custom_call.1}
  #allocation0 [shape = 'u32[]', space=smem, size = 0x4, offset = 0x4, fixed_abs, tag = 'smem constant byte address 0x4 - core index']
  #allocation1 [shape = 'u32[144,128]{1,0:T(1,128)}', space=vmem, size = 0x12000, scoped, tag = 'internal scratch']
  %s0 = inlined_call_operand.hbm [shape: f32[32,128], index: 0, kind: input, shape index: {}]
  %s1 = inlined_call_operand.hbm [shape: f32[32,32], index: 1, kind: input, shape index: {}]
  %s2 = inlined_call_operand.hbm [shape: f32[128,128], index: 2, kind: input, shape index: {}]
  %s3 = inlined_call_operand.hbm [shape: f32[1,64], index: 3, kind: input, shape index: {}]
  %s4 = inlined_call_operand.hbm [shape: f32[1,64], index: 4, kind: input, shape index: {}]
  %s5 = inlined_call_operand.hbm [shape: bf16[64,192], index: 5, kind: input, shape index: {}]
  %s6 = inlined_call_operand.vmem [shape: f32[1,192], index: 6, kind: input, shape index: {}]
  %s7 = inlined_call_operand.hbm [shape: f32[32,32], index: 7, kind: input, shape index: {}]
  %s8 = inlined_call_operand.hbm [shape: bf16[4,64], index: 8, kind: input, shape index: {}]
  %s9 = inlined_call_operand.vmem [shape: bf16[64,128], index: 9, kind: input, shape index: {}]
  %s10 = inlined_call_operand.vmem [shape: f32[1,128], index: 10, kind: input, shape index: {}]
  %s11 = inlined_call_operand.hbm [shape: f32[32,128], index: 11, kind: output, shape index: {}]
  %s12 = sld [smem:[#allocation0]]
  $region86: #{tpu_custom_call.1} parent=0
    _
  %s14 = ssub.s32 1, %s12
  %s15 = scalar_select 0, %s14, %s12
  $region1: #{tpu_custom_call.1} parent=0
    #allocation2 [shape = 'u8[16384]{0}', space=vmem, size = 0x4000, scoped, tag = 'input window, operand 0, single buffered']
    #allocation3 [shape = 's32[1]{0}', space=sflag, size = 0x4, scoped, tag = 'scoped memory for tpu_custom_call.1']
    #allocation4 [shape = 's32[1]{0}', space=sflag, size = 0x4, scoped, tag = 'scoped memory for tpu_custom_call.1']
    #allocation5 [shape = 'u8[16384]{0}', space=vmem, size = 0x4000, scoped, tag = 'input window, operand 1, single buffered']
    #allocation6 [shape = 's32[1]{0}', space=sflag, size = 0x4, scoped, tag = 'scoped memory for tpu_custom_call.1']
    #allocation7 [shape = 'u8[65536]{0}', space=vmem, size = 0x10000, scoped, tag = 'input window, operand 2, single buffered']
    #allocation8 [shape = 'u8[512]{0}', space=vmem, size = 0x400, scoped, tag = 'input window, operand 3, single buffered']
    #allocation9 [shape = 's32[1]{0}', space=sflag, size = 0x4, scoped, tag = 'scoped memory for tpu_custom_call.1']
    #allocation10 [shape = 'u8[512]{0}', space=vmem, size = 0x400, scoped, tag = 'input window, operand 4, single buffered']
    #allocation11 [shape = 'u8[32768]{0}', space=vmem, size = 0x8000, scoped, tag = 'input window, operand 5, single buffered']
    #allocation12 [shape = 's32[1]{0}', space=sflag, size = 0x4, scoped, tag = 'scoped memory for tpu_custom_call.1']
    #allocation13 [shape = 'u8[16384]{0}', space=vmem, size = 0x4000, scoped, tag = 'input window, operand 7, single buffered']
    #allocation14 [shape = 'u8[1024]{0}', space=vmem, size = 0x400, scoped, tag = 'input window, operand 8, single buffered']
    #allocation15 [shape = 's32[1]{0}', space=sflag, size = 0x4, scoped, tag = 'scoped memory for tpu_custom_call.1']
    #allocation16 [shape = 'u8[16384]{0}', space=vmem, size = 0x4000, scoped, tag = 'output window, operand 0, single buffered']
    %16 = vsyncpa [#allocation3], 0
    %17 = vsyncpa [#allocation6], 0
    %18 = vsyncpa [#allocation9], 0
    %19 = vsyncpa [#allocation12], 0
    %20 = vsyncpa [#allocation15], 0
    %21 = vsyncpa [#allocation4], 0
    // Predicated region
    $region2: #{tpu_custom_call.1} parent=1 // pred_check
      _
    $region3: #{tpu_custom_call.1} parent=1 // pred_check_branch
      %23 = sbr.rel (0) target = $region5
    $region4: #{tpu_custom_call.1} parent=1 // pred_region
      %s25 = ssub.s32 512, 512
      %26 = vsyncadd [#allocation3], %s25
      %s27 = sshll.u32 [#allocation2], 4
      %s28 = int_to_ptr.vmem [resolvable:$true] %s27
      %33 = dma.hbm_to_vmem [thread:$0]  %s0, 512, %s28, [#allocation3], 128, 128, 8
    $region5: #{tpu_custom_call.1} parent=1 // pred_fallthru
      _
    // Predicated region
    $region6: #{tpu_custom_call.1} parent=1 // pred_check
      _
    $region7: #{tpu_custom_call.1} parent=1 // pred_check_branch
      %35 = sbr.rel (0) target = $region9
    $region8: #{tpu_custom_call.1} parent=1 // pred_region
      %s37 = ssub.s32 512, 512
      %38 = vsyncadd [#allocation6], %s37
      %s39 = sshll.u32 [#allocation5], 4
      %s40 = int_to_ptr.vmem [resolvable:$true] %s39
      %45 = dma.hbm_to_vmem [thread:$0]  %s1, 512, %s40, [#allocation6], 128, 128, 8
    $region9: #{tpu_custom_call.1} parent=1 // pred_fallthru
      _
    // Predicated region
    $region10: #{tpu_custom_call.1} parent=1 // pred_check
      _
    $region11: #{tpu_custom_call.1} parent=1 // pred_check_branch
      %47 = sbr.rel (0) target = $region13
    $region12: #{tpu_custom_call.1} parent=1 // pred_region
      %s49 = ssub.s32 2048, 2048
      %50 = vsyncadd [#allocation6], %s49
      %s51 = sshll.u32 [#allocation7], 4
      %s52 = int_to_ptr.vmem [resolvable:$true] %s51
      %57 = dma.hbm_to_vmem [thread:$0]  %s2, 2048, %s52, [#allocation6], 128, 128, 8
    $region13: #{tpu_custom_call.1} parent=1 // pred_fallthru
      _
    // Predicated region
    $region14: #{tpu_custom_call.1} parent=1 // pred_check
      _
    $region15: #{tpu_custom_call.1} parent=1 // pred_check_branch
      %59 = sbr.rel (0) target = $region17
    $region16: #{tpu_custom_call.1} parent=1 // pred_region
      %s61 = ssub.s32 16, 16
      %62 = vsyncadd [#allocation9], %s61
      %s64 = sshll.u32 [#allocation8], 4
      %s65 = int_to_ptr.vmem [resolvable:$true] %s64
      %67 = dma.hbm_to_vmem [thread:$0]  %s3, 16, %s65, [#allocation9]
    $region17: #{tpu_custom_call.1} parent=1 // pred_fallthru
      _
    // Predicated region
    $region18: #{tpu_custom_call.1} parent=1 // pred_check
      _
    $region19: #{tpu_custom_call.1} parent=1 // pred_check_branch
      %69 = sbr.rel (0) target = $region21
    $region20: #{tpu_custom_call.1} parent=1 // pred_region
      %s71 = ssub.s32 16, 16
      %72 = vsyncadd [#allocation9], %s71
      %s74 = sshll.u32 [#allocation10], 4
      %s75 = int_to_ptr.vmem [resolvable:$true] %s74
      %77 = dma.hbm_to_vmem [thread:$0]  %s4, 16, %s75, [#allocation9]
    $region21: #{tpu_custom_call.1} parent=1 // pred_fallthru
      _
    // Predicated region
    $region22: #{tpu_custom_call.1} parent=1 // pred_check
      _
    $region23: #{tpu_custom_call.1} parent=1 // pred_check_branch
      %79 = sbr.rel (0) target = $region25
    $region24: #{tpu_custom_call.1} parent=1 // pred_region
      %s81 = ssub.s32 1024, 1024
      %82 = vsyncadd [#allocation12], %s81
      %s83 = sshll.u32 [#allocation11], 4
      %s84 = int_to_ptr.vmem [resolvable:$true] %s83
      %89 = dma.hbm_to_vmem [thread:$0]  %s5, 1024, %s84, [#allocation12], 128, 128, 8
    $region25: #{tpu_custom_call.1} parent=1 // pred_fallthru
      _
    // Predicated region
    $region26: #{tpu_custom_call.1} parent=1 // pred_check
      _
    $region27: #{tpu_custom_call.1} parent=1 // pred_check_branch
      %91 = sbr.rel (0) target = $region29
    $region28: #{tpu_custom_call.1} parent=1 // pred_region
      _
    $region29: #{tpu_custom_call.1} parent=1 // pred_fallthru
      _
    // Predicated region
    $region30: #{tpu_custom_call.1} parent=1 // pred_check
      _
    $region31: #{tpu_custom_call.1} parent=1 // pred_check_branch
      %93 = sbr.rel (0) target = $region33
    $region32: #{tpu_custom_call.1} parent=1 // pred_region
      %s95 = ssub.s32 512, 512
      %96 = vsyncadd [#allocation12], %s95
      %s97 = sshll.u32 [#allocation13], 4
      %s98 = int_to_ptr.vmem [resolvable:$true] %s97
      %103 = dma.hbm_to_vmem [thread:$0]  %s7, 512, %s98, [#allocation12], 128, 128, 8
    $region33: #{tpu_custom_call.1} parent=1 // pred_fallthru
      _
    // Predicated region
    $region34: #{tpu_custom_call.1} parent=1 // pred_check
      _
    $region35: #{tpu_custom_call.1} parent=1 // pred_check_branch
      %105 = sbr.rel (0) target = $region37
    $region36: #{tpu_custom_call.1} parent=1 // pred_region
      %s107 = ssub.s32 32, 32
      %108 = vsyncadd [#allocation15], %s107
      %s110 = sshll.u32 [#allocation14], 4
      %s111 = int_to_ptr.vmem [resolvable:$true] %s110
      %113 = dma.hbm_to_vmem [thread:$0]  %s8, 32, %s111, [#allocation15]
    $region37: #{tpu_custom_call.1} parent=1 // pred_fallthru
      _
    // Predicated region
    $region38: #{tpu_custom_call.1} parent=1 // pred_check
      _
    $region39: #{tpu_custom_call.1} parent=1 // pred_check_branch
      %115 = sbr.rel (0) target = $region41
    $region40: #{tpu_custom_call.1} parent=1 // pred_region
      _
    $region41: #{tpu_custom_call.1} parent=1 // pred_fallthru
      _
    // Predicated region
    $region42: #{tpu_custom_call.1} parent=1 // pred_check
      _
    $region43: #{tpu_custom_call.1} parent=1 // pred_check_branch
      %117 = sbr.rel (0) target = $region45
    $region44: #{tpu_custom_call.1} parent=1 // pred_region
      _
    $region45: #{tpu_custom_call.1} parent=1 // pred_fallthru
      _
    // Predicated region
    $region46: #{tpu_custom_call.1} parent=1 // pred_check
      _
    $region47: #{tpu_custom_call.1} parent=1 // pred_check_branch
      %119 = sbr.rel (0) target = $region49
    $region48: #{tpu_custom_call.1} parent=1 // pred_region
      %120 = dma.done [#allocation3], 512
    $region49: #{tpu_custom_call.1} parent=1 // pred_fallthru
      _
    // Predicated region
    $region50: #{tpu_custom_call.1} parent=1 // pred_check
      _
    $region51: #{tpu_custom_call.1} parent=1 // pred_check_branch
      %122 = sbr.rel (0) target = $region53
    $region52: #{tpu_custom_call.1} parent=1 // pred_region
      %123 = dma.done [#allocation6], 512
    $region53: #{tpu_custom_call.1} parent=1 // pred_fallthru
      _
    // Predicated region
    $region54: #{tpu_custom_call.1} parent=1 // pred_check
      _
    $region55: #{tpu_custom_call.1} parent=1 // pred_check_branch
      %125 = sbr.rel (0) target = $region57
    $region56: #{tpu_custom_call.1} parent=1 // pred_region
      %126 = dma.done [#allocation6], 2048
    $region57: #{tpu_custom_call.1} parent=1 // pred_fallthru
      _
    // Predicated region
    $region58: #{tpu_custom_call.1} parent=1 // pred_check
      _
    $region59: #{tpu_custom_call.1} parent=1 // pred_check_branch
      %128 = sbr.rel (0) target = $region61
    $region60: #{tpu_custom_call.1} parent=1 // pred_region
      %129 = dma.done [#allocation9], 16
    $region61: #{tpu_custom_call.1} parent=1 // pred_fallthru
      _
    // Predicated region
    $region62: #{tpu_custom_call.1} parent=1 // pred_check
      _
    $region63: #{tpu_custom_call.1} parent=1 // pred_check_branch
      %131 = sbr.rel (0) target = $region65
    $region64: #{tpu_custom_call.1} parent=1 // pred_region
      %132 = dma.done [#allocation9], 16
    $region65: #{tpu_custom_call.1} parent=1 // pred_fallthru
      _
    // Predicated region
    $region66: #{tpu_custom_call.1} parent=1 // pred_check
      _
    $region67: #{tpu_custom_call.1} parent=1 // pred_check_branch
      %134 = sbr.rel (0) target = $region69
    $region68: #{tpu_custom_call.1} parent=1 // pred_region
      %135 = dma.done [#allocation12], 1024
    $region69: #{tpu_custom_call.1} parent=1 // pred_fallthru
      _
    // Predicated region
    $region70: #{tpu_custom_call.1} parent=1 // pred_check
      _
    $region71: #{tpu_custom_call.1} parent=1 // pred_check_branch
      %137 = sbr.rel (0) target = $region73
    $region72: #{tpu_custom_call.1} parent=1 // pred_region
      %138 = dma.done [#allocation12], 512
    $region73: #{tpu_custom_call.1} parent=1 // pred_fallthru
      _
    // Predicated region
    $region74: #{tpu_custom_call.1} parent=1 // pred_check
      _
    $region75: #{tpu_custom_call.1} parent=1 // pred_check_branch
      %140 = sbr.rel (0) target = $region77
    $region76: #{tpu_custom_call.1} parent=1 // pred_region
      %141 = dma.done [#allocation15], 32
    $region77: #{tpu_custom_call.1} parent=1 // pred_fallthru
      _
    %v143 = vld [vmem:[#allocation2] sm:$0xff]
    %v144 = vld [vmem:[#allocation2 + $0x8] sm:$0xff]
    %v145 = vld [vmem:[#allocation2 + $0x10] sm:$0xff]
    %v146 = vld [vmem:[#allocation2 + $0x18] sm:$0xff]
    %v147 = vld [vmem:[#allocation5] sm:$0xff]
    %v148 = vld [vmem:[#allocation5 + $0x8] sm:$0xff]
    %v149 = vld [vmem:[#allocation5 + $0x10] sm:$0xff]
    %v150 = vld [vmem:[#allocation5 + $0x18] sm:$0xff]
    %vm151 = vcmask 261120
    %v153 = vsel %vm151, %v147, 0
    %v156 = vsel %vm151, %v148, 0
    %v159 = vsel %vm151, %v149, 0
    %v162 = vsel %vm151, %v150, 0
    %164 = vmatprep.subr.mxu0 0.0
    %165 = vmatpush1.msra.mxu0 %v143
    %166 = vmatprep.subr.mxu0 0.0
    %167 = vmatpush1.msra.mxu0 %v144
    %168 = vmatprep.subr.mxu0 0.0
    %169 = vmatpush1.msra.mxu0 %v145
    %170 = vmatprep.subr.mxu0 0.0
    %171 = vmatpush1.msra.mxu0 %v146
    %172 = vmatprep.subr.mxu0 0.0
    %173 = vmatpush1.msra.mxu0 0.0
    %174 = vmatprep.subr.mxu0 0.0
    %175 = vmatpush1.msra.mxu0 0.0
    %176 = vmatprep.subr.mxu0 0.0
    %177 = vmatpush1.msra.mxu0 0.0
    %178 = vmatprep.subr.mxu0 0.0
    %179 = vmatpush1.msra.mxu0 0.0
    %180 = vmatprep.subr.mxu0 0.0
    %181 = vmatpush1.msra.mxu0 0.0
    %182 = vmatprep.subr.mxu0 0.0
    %183 = vmatpush1.msra.mxu0 0.0
    %184 = vmatprep.subr.mxu0 0.0
    %185 = vmatpush1.msra.mxu0 0.0
    %186 = vmatprep.subr.mxu0 0.0
    %187 = vmatpush1.msra.mxu0 0.0
    %188 = vmatprep.subr.mxu0 0.0
    %189 = vmatpush1.msra.mxu0 0.0
    %190 = vmatprep.subr.mxu0 0.0
    %191 = vmatpush1.msra.mxu0 0.0
    %192 = vmatprep.subr.mxu0 0.0
    %193 = vmatpush1.msra.mxu0 0.0
    %194 = vmatprep.subr.mxu0 0.0
    %195 = vmatpush1.msra.mxu0 0.0
    %196 = vmatprep.subr.mxu0 0.0
    %197 = vmatpush1.msra.mxu0 0.0
    %198 = vmatprep.subr.mxu0 0.0
    %199 = vmatpush1.msra.mxu0 0.0
    %200 = vmatprep.subr.mxu0 0.0
    %201 = vmatpush1.msra.mxu0 0.0
    %202 = vmatprep.subr.mxu0 0.0
    %203 = vmatpush1.msra.mxu0 0.0
    %204 = vmatprep.subr.mxu0 0.0
    %205 = vmatpush1.msra.mxu0 0.0
    %206 = vmatprep.subr.mxu0 0.0
    %207 = vmatpush1.msra.mxu0 0.0
    %208 = vmatprep.subr.mxu0 0.0
    %209 = vmatpush1.msra.mxu0 0.0
    %210 = vmatprep.subr.mxu0 0.0
    %211 = vmatpush1.msra.mxu0 0.0
    %212 = vmatprep.subr.mxu0 0.0
    %213 = vmatpush1.msra.mxu0 0.0
    %214 = vmatprep.subr.mxu0 0.0
    %215 = vmatpush1.msra.mxu0 0.0
    %216 = vmatprep.subr.mxu0 0.0
    %217 = vmatpush1.msra.mxu0 0.0
    %218 = vmatprep.subr.mxu0 0.0
    %219 = vmatpush1.msra.mxu0 0.0
    %220 = vmatprep.subr.mxu0 0.0
    %221 = vmatpush1.msra.mxu0 0.0
    %222 = vmatprep.subr.mxu0 0.0
    %223 = vmatpush1.msra.mxu0 0.0
    %224 = vmatprep.subr.mxu0 0.0
    %225 = vmatpush1.msra.mxu0 0.0
    %226 = vmatprep.subr.mxu0 0.0
    %227 = vmatpush1.msra.mxu0 0.0
    %228 = vmatprep.mubr.f32.mxu0 0.0
    %229 = vmatmul.mubr.f32.gmra.mrb[0].mxu0 %v153
    %v230 = vpop.f32.mrb[0].mxu0
    %v231 = vadd.f32 0.0, %v230
    %v232 = vpop.f32.mrb[0].mxu0
    %233 = vmatprep.mubr.f32.mxu0 0.0
    %234 = vmatmul.mubr.f32.gmra.mrb[0].mxu0 %v156
    %v235 = vpop.f32.mrb[0].mxu0
    %v236 = vadd.f32 0.0, %v235
    %v237 = vpop.f32.mrb[0].mxu0
    %238 = vmatprep.mubr.f32.mxu0 0.0
    %239 = vmatmul.mubr.f32.gmra.mrb[0].mxu0 %v159
    %v240 = vpop.f32.mrb[0].mxu0
    %v241 = vadd.f32 0.0, %v240
    %v242 = vpop.f32.mrb[0].mxu0
    %243 = vmatprep.mubr.f32.mxu0 0.0
    %244 = vmatmul.mubr.f32.gmra.mrb[0].mxu0 %v162
    %v245 = vpop.f32.mrb[0].mxu0
    %v246 = vadd.f32 0.0, %v245
    %v247 = vpop.f32.mrb[0].mxu0
    %248 = vdwg.mxu0
    %v249 = vld [vmem:[#allocation7] sm:$0xff]
    %v250 = vld [vmem:[#allocation7 + $0x8] sm:$0xff]
    %v251 = vld [vmem:[#allocation7 + $0x10] sm:$0xff]
    %v252 = vld [vmem:[#allocation7 + $0x18] sm:$0xff]
    %v253 = vld [vmem:[#allocation7 + $0x20] sm:$0xff]
    %v254 = vld [vmem:[#allocation7 + $0x28] sm:$0xff]
    %v255 = vld [vmem:[#allocation7 + $0x30] sm:$0xff]
    %v256 = vld [vmem:[#allocation7 + $0x38] sm:$0xff]
    %v257 = vld [vmem:[#allocation7 + $0x40] sm:$0xff]
    %v258 = vld [vmem:[#allocation7 + $0x48] sm:$0xff]
    %v259 = vld [vmem:[#allocation7 + $0x50] sm:$0xff]
    %v260 = vld [vmem:[#allocation7 + $0x58] sm:$0xff]
    %v261 = vld [vmem:[#allocation7 + $0x60] sm:$0xff]
    %v262 = vld [vmem:[#allocation7 + $0x68] sm:$0xff]
    %v263 = vld [vmem:[#allocation7 + $0x70] sm:$0xff]
    %v264 = vld [vmem:[#allocation7 + $0x78] sm:$0xff]
    %265 = vmatprep.subr.mxu0 0.0
    %266 = vmatpush1.msra.mxu0 %v249
    %267 = vmatprep.subr.mxu0 0.0
    %268 = vmatpush1.msra.mxu0 %v250
    %269 = vmatprep.subr.mxu0 0.0
    %270 = vmatpush1.msra.mxu0 %v251
    %271 = vmatprep.subr.mxu0 0.0
    %272 = vmatpush1.msra.mxu0 %v252
    %273 = vmatprep.subr.mxu0 0.0
    %274 = vmatpush1.msra.mxu0 %v253
    %275 = vmatprep.subr.mxu0 0.0
    %276 = vmatpush1.msra.mxu0 %v254
    %277 = vmatprep.subr.mxu0 0.0
    %278 = vmatpush1.msra.mxu0 %v255
    %279 = vmatprep.subr.mxu0 0.0
    %280 = vmatpush1.msra.mxu0 %v256
    %281 = vmatprep.subr.mxu0 0.0
    %282 = vmatpush1.msra.mxu0 %v257
    %283 = vmatprep.subr.mxu0 0.0
    %284 = vmatpush1.msra.mxu0 %v258
    %285 = vmatprep.subr.mxu0 0.0
    %286 = vmatpush1.msra.mxu0 %v259
    %287 = vmatprep.subr.mxu0 0.0
    %288 = vmatpush1.msra.mxu0 %v260
    %289 = vmatprep.subr.mxu0 0.0
    %290 = vmatpush1.msra.mxu0 %v261
    %291 = vmatprep.subr.mxu0 0.0
    %292 = vmatpush1.msra.mxu0 %v262
    %293 = vmatprep.subr.mxu0 0.0
    %294 = vmatpush1.msra.mxu0 %v263
    %295 = vmatprep.subr.mxu0 0.0
    %296 = vmatpush1.msra.mxu0 %v264
    %297 = vmatprep.subr.mxu0 0.0
    %298 = vmatpush1.msra.mxu0 0.0
    %299 = vmatprep.subr.mxu0 0.0
    %300 = vmatpush1.msra.mxu0 0.0
    %301 = vmatprep.subr.mxu0 0.0
    %302 = vmatpush1.msra.mxu0 0.0
    %303 = vmatprep.subr.mxu0 0.0
    %304 = vmatpush1.msra.mxu0 0.0
    %305 = vmatprep.subr.mxu0 0.0
    %306 = vmatpush1.msra.mxu0 0.0
    %307 = vmatprep.subr.mxu0 0.0
    %308 = vmatpush1.msra.mxu0 0.0
    %309 = vmatprep.subr.mxu0 0.0
    %310 = vmatpush1.msra.mxu0 0.0
    %311 = vmatprep.subr.mxu0 0.0
    %312 = vmatpush1.msra.mxu0 0.0
    %313 = vmatprep.subr.mxu0 0.0
    %314 = vmatpush1.msra.mxu0 0.0
    %315 = vmatprep.subr.mxu0 0.0
    %316 = vmatpush1.msra.mxu0 0.0
    %317 = vmatprep.subr.mxu0 0.0
    %318 = vmatpush1.msra.mxu0 0.0
    %319 = vmatprep.subr.mxu0 0.0
    %320 = vmatpush1.msra.mxu0 0.0
    %321 = vmatprep.subr.mxu0 0.0
    %322 = vmatpush1.msra.mxu0 0.0
    %323 = vmatprep.subr.mxu0 0.0
    %324 = vmatpush1.msra.mxu0 0.0
    %325 = vmatprep.subr.mxu0 0.0
    %326 = vmatpush1.msra.mxu0 0.0
    %327 = vmatprep.subr.mxu0 0.0
    %328 = vmatpush1.msra.mxu0 0.0
    %329 = vmatprep.mubr.f32.mxu0 0.0
    %330 = vmatmul.mubr.f32.gmra.mrb[0].mxu0 %v231
    %v331 = vpop.f32.mrb[0].mxu0
    %v332 = vadd.f32 0.0, %v331
    %v333 = vpop.f32.mrb[0].mxu0
    %334 = vmatprep.mubr.f32.mxu0 0.0
    %335 = vmatmul.mubr.f32.gmra.mrb[0].mxu0 %v236
    %v336 = vpop.f32.mrb[0].mxu0
    %v337 = vadd.f32 0.0, %v336
    %v338 = vpop.f32.mrb[0].mxu0
    %339 = vmatprep.mubr.f32.mxu0 0.0
    %340 = vmatmul.mubr.f32.gmra.mrb[0].mxu0 %v241
    %v341 = vpop.f32.mrb[0].mxu0
    %v342 = vadd.f32 0.0, %v341
    %v343 = vpop.f32.mrb[0].mxu0
    %344 = vmatprep.mubr.f32.mxu0 0.0
    %345 = vmatmul.mubr.f32.gmra.mrb[0].mxu0 %v246
    %v346 = vpop.f32.mrb[0].mxu0
    %v347 = vadd.f32 0.0, %v346
    %v348 = vpop.f32.mrb[0].mxu0
    %349 = vdwg.mxu0
    %v350 = vsub.f32 %v143, %v332
    %v351 = vsub.f32 %v144, %v337
    %v352 = vsub.f32 %v145, %v342
    %v353 = vsub.f32 %v146, %v347
    %v354 = vmul.f32 %v332, %v332
    %v355 = vmul.f32 %v337, %v337
    %v356 = vmul.f32 %v342, %v342
    %v357 = vmul.f32 %v347, %v347
    %362 = vrot.lane.b32.xlu0 %v354, 64
    %v363 = vpop.permute.xlu0 %362
    %364 = vrot.lane.b32.xlu0 %v355, 64
    %v365 = vpop.permute.xlu0 %364
    %366 = vrot.lane.b32.xlu0 %v356, 64
    %v367 = vpop.permute.xlu0 %366
    %368 = vrot.lane.b32.xlu0 %v357, 64
    %v369 = vpop.permute.xlu0 %368
    %v374 = vsub.f32 %v332, %v363
    %v375 = vsub.f32 %v337, %v365
    %v376 = vsub.f32 %v342, %v367
    %v377 = vsub.f32 %v347, %v369
    %v378 = vadd.f32 %v374, 1e-05
    %v379 = vadd.f32 %v375, 1e-05
    %v380 = vadd.f32 %v376, 1e-05
    %v381 = vadd.f32 %v377, 1e-05
    %v382 = vrsqrt.pop %v378
    %v383 = vrsqrt.pop %v379
    %v384 = vrsqrt.pop %v380
    %v385 = vrsqrt.pop %v381
    %390 = vrot.lane.b32.xlu0 %v382, 64
    %v391 = vpop.permute.xlu0 %390
    %392 = vrot.lane.b32.xlu0 %v383, 64
    %v393 = vpop.permute.xlu0 %392
    %394 = vrot.lane.b32.xlu0 %v384, 64
    %v395 = vpop.permute.xlu0 %394
    %396 = vrot.lane.b32.xlu0 %v385, 64
    %v397 = vpop.permute.xlu0 %396
    %v402 = vmul.f32 %v350, %v391
    %v403 = vmul.f32 %v351, %v393
    %v404 = vmul.f32 %v352, %v395
    %v405 = vmul.f32 %v353, %v397
    %v406 = vld [vmem:[#allocation8] sm:$0x1]
    %v408 = vlaneseq
    %v409 = vshrl.u32 %v408, 7
    %v410 = vsub.s32 0, %v409
    %v411 = vrot.slane %v406, %v410
    %v413 = vmul.f32 %v402, %v411
    %v414 = vmul.f32 %v403, %v411
    %v415 = vmul.f32 %v404, %v411
    %v416 = vmul.f32 %v405, %v411
    %v417 = vld [vmem:[#allocation10] sm:$0x1]
    %v419 = vlaneseq
    %v420 = vshrl.u32 %v419, 7
    %v421 = vsub.s32 0, %v420
    %v422 = vrot.slane %v417, %v421
    %v424 = vadd.f32 %v413, %v422
    %v425 = vadd.f32 %v414, %v422
    %v426 = vadd.f32 %v415, %v422
    %v427 = vadd.f32 %v416, %v422
    %v428 = vpack.c.bf16 %v425, %v424
    %v429 = vpack.c.bf16 %v427, %v426
    %v430 = vld [vmem:[#allocation11] sm:$0xff]
    %v431 = vld [vmem:[#allocation11 + $0x8] sm:$0xff]
    %v432 = vld [vmem:[#allocation11 + $0x10] sm:$0xff]
    %v433 = vld [vmem:[#allocation11 + $0x18] sm:$0xff]
    %v434 = vld [vmem:[#allocation11 + $0x20] sm:$0xff]
    %v435 = vld [vmem:[#allocation11 + $0x28] sm:$0xff]
    %v436 = vld [vmem:[#allocation11 + $0x30] sm:$0xff]
    %v437 = vld [vmem:[#allocation11 + $0x38] sm:$0xff]
    %v438 = vld [vmem:[%s6] sm:$0x3]
    %v440 = vlaneseq
    %v441 = vshrl.u32 %v440, 7
    %v442 = vsub.s32 0, %v441
    %v443 = vrot.slane %v438, %v442
    %v444 = vlaneseq
    %v445 = vshrl.u32 %v444, 7
    %v446 = vsub.s32 1, %v445
    %v447 = vrot.slane %v438, %v446
    %v458 = vunpack.c.l.b16 %v430
    %v459 = vunpack.c.h.b16 %v430
    %v460 = vunpack.c.l.b16 %v431
    %v461 = vunpack.c.h.b16 %v431
    %v462 = vunpack.c.l.b16 %v432
    %v463 = vunpack.c.h.b16 %v432
    %v464 = vunpack.c.l.b16 %v433
    %v465 = vunpack.c.h.b16 %v433
    %v466 = vunpack.c.l.b16 %v434
    %v467 = vunpack.c.h.b16 %v434
    %v468 = vunpack.c.l.b16 %v435
    %v469 = vunpack.c.h.b16 %v435
    %v470 = vunpack.c.l.b16 %v436
    %v471 = vunpack.c.h.b16 %v436
    %v472 = vunpack.c.l.b16 %v437
    %v473 = vunpack.c.h.b16 %v437
    %v474 = vpack.c.b16 %v460, %v458
    %v475 = vpack.c.b16 %v461, %v459
    %v476 = vpack.c.b16 %v464, %v462
    %v477 = vpack.c.b16 %v465, %v463
    %v478 = vpack.c.b16 %v468, %v466
    %v479 = vpack.c.b16 %v469, %v467
    %v480 = vpack.c.b16 %v472, %v470
    %v481 = vpack.c.b16 %v473, %v471
    %vm490 = vcmask 523264
    %v492 = vsel %vm490, %v428, 0
    %v495 = vsel %vm490, %v429, 0
    %497 = vmatprep.subr.bf16.mxu0 %v475
    %498 = vmatpush1.bf16.msra.mxu0 %v474
    %499 = vmatprep.subr.bf16.mxu0 %v477
    %500 = vmatpush1.bf16.msra.mxu0 %v476
    %501 = vmatprep.subr.bf16.mxu0 %v479
    %502 = vmatpush1.bf16.msra.mxu0 %v478
    %503 = vmatprep.subr.bf16.mxu0 %v481
    %504 = vmatpush1.bf16.msra.mxu0 %v480
    %505 = vmatprep.subr.bf16.mxu0 0
    %506 = vmatpush1.bf16.msra.mxu0 0
    %507 = vmatprep.subr.bf16.mxu0 0
    %508 = vmatpush1.bf16.msra.mxu0 0
    %509 = vmatprep.subr.bf16.mxu0 0
    %510 = vmatpush1.bf16.msra.mxu0 0
    %511 = vmatprep.subr.bf16.mxu0 0
    %512 = vmatpush1.bf16.msra.mxu0 0
    %513 = vmatprep.subr.bf16.mxu0 0
    %514 = vmatpush1.bf16.msra.mxu0 0
    %515 = vmatprep.subr.bf16.mxu0 0
    %516 = vmatpush1.bf16.msra.mxu0 0
    %517 = vmatprep.subr.bf16.mxu0 0
    %518 = vmatpush1.bf16.msra.mxu0 0
    %519 = vmatprep.subr.bf16.mxu0 0
    %520 = vmatpush1.bf16.msra.mxu0 0
    %521 = vmatprep.subr.bf16.mxu0 0
    %522 = vmatpush1.bf16.msra.mxu0 0
    %523 = vmatprep.subr.bf16.mxu0 0
    %524 = vmatpush1.bf16.msra.mxu0 0
    %525 = vmatprep.subr.bf16.mxu0 0
    %526 = vmatpush1.bf16.msra.mxu0 0
    %527 = vmatprep.subr.bf16.mxu0 0
    %528 = vmatpush1.bf16.msra.mxu0 0
    %529 = vmatprep.mubr.bf16.mxu0 0
    %530 = vmatmul.mubr.bf16.gmra.mrb[0].mxu0 %v492
    %v531 = vpop.f32.mrb[0].mxu0
    %v532 = vadd.f32 %v443, %v531
    %v533 = vpop.f32.mrb[0].mxu0
    %v534 = vadd.f32 %v447, %v533
    %v535 = vpop.f32.mrb[0].mxu0
    %v536 = vadd.f32 %v443, %v535
    %v537 = vpop.f32.mrb[0].mxu0
    %v538 = vadd.f32 %v447, %v537
    %539 = vmatprep.mubr.bf16.mxu0 0
    %540 = vmatmul.mubr.bf16.gmra.mrb[0].mxu0 %v495
    %v541 = vpop.f32.mrb[0].mxu0
    %v542 = vadd.f32 %v443, %v541
    %v543 = vpop.f32.mrb[0].mxu0
    %v544 = vadd.f32 %v447, %v543
    %v545 = vpop.f32.mrb[0].mxu0
    %v546 = vadd.f32 %v443, %v545
    %v547 = vpop.f32.mrb[0].mxu0
    %v548 = vadd.f32 %v447, %v547
    %549 = vdwg.mxu0
    %554 = vrot.lane.b32.xlu0 %v532, 112
    %v555 = vpop.permute.xlu0 %554
    %556 = vrot.lane.b32.xlu0 %v536, 112
    %v557 = vpop.permute.xlu0 %556
    %558 = vrot.lane.b32.xlu0 %v542, 112
    %v559 = vpop.permute.xlu0 %558
    %560 = vrot.lane.b32.xlu0 %v546, 112
    %v561 = vpop.permute.xlu0 %560
    %566 = vrot.lane.b32.xlu0 %v532, 96
    %v567 = vpop.permute.xlu0 %566
    %568 = vrot.lane.b32.xlu0 %v536, 96
    %v569 = vpop.permute.xlu0 %568
    %570 = vrot.lane.b32.xlu0 %v542, 96
    %v571 = vpop.permute.xlu0 %570
    %572 = vrot.lane.b32.xlu0 %v546, 96
    %v573 = vpop.permute.xlu0 %572
    %578 = vrot.lane.b32.xlu0 %v532, 80
    %v579 = vpop.permute.xlu0 %578
    %580 = vrot.lane.b32.xlu0 %v536, 80
    %v581 = vpop.permute.xlu0 %580
    %582 = vrot.lane.b32.xlu0 %v542, 80
    %v583 = vpop.permute.xlu0 %582
    %584 = vrot.lane.b32.xlu0 %v546, 80
    %v585 = vpop.permute.xlu0 %584
    %590 = vrot.lane.b32.xlu0 %v532, 64
    %v591 = vpop.permute.xlu0 %590
    %592 = vrot.lane.b32.xlu0 %v536, 64
    %v593 = vpop.permute.xlu0 %592
    %594 = vrot.lane.b32.xlu0 %v542, 64
    %v595 = vpop.permute.xlu0 %594
    %596 = vrot.lane.b32.xlu0 %v546, 64
    %v597 = vpop.permute.xlu0 %596
    %602 = vxpose.xlu0.b32.start [1/16] %v591, 128
    %603 = vxpose.xlu0.b32.cont [2/16] %v593, 128
    %604 = vxpose.xlu0.b32.cont [3/16] %v595, 128
    %605 = vxpose.xlu0.b32.cont [4/16] %v597, 128
    %606 = vxpose.xlu0.b32.cont [5/16] 0.0, 128
    %607 = vxpose.xlu0.b32.cont [6/16] 0.0, 128
    %608 = vxpose.xlu0.b32.cont [7/16] 0.0, 128
    %609 = vxpose.xlu0.b32.cont [8/16] 0.0, 128
    %610 = vxpose.xlu0.b32.cont [9/16] 0.0, 128
    %611 = vxpose.xlu0.b32.cont [10/16] 0.0, 128
    %612 = vxpose.xlu0.b32.cont [11/16] 0.0, 128
    %613 = vxpose.xlu0.b32.cont [12/16] 0.0, 128
    %614 = vxpose.xlu0.b32.cont [13/16] 0.0, 128
    %615 = vxpose.xlu0.b32.cont [14/16] 0.0, 128
    %616 = vxpose.xlu0.b32.cont [15/16] 0.0, 128
    %617 = vxpose.xlu0.b32.end [16/16] 0.0, 128
    %v618 = vpop.trf.xlu0
    %v619 = vpop.trf.xlu0
    %v620 = vpop.trf.xlu0
    %v621 = vpop.trf.xlu0
    %v622 = vpop.trf.xlu0
    %v623 = vpop.trf.xlu0
    %v624 = vpop.trf.xlu0
    %v625 = vpop.trf.xlu0
    %v626 = vpop.trf.xlu0
    %v627 = vpop.trf.xlu0
    %v628 = vpop.trf.xlu0
    %v629 = vpop.trf.xlu0
    %v630 = vpop.trf.xlu0
    %v631 = vpop.trf.xlu0
    %v632 = vpop.trf.xlu0
    %v633 = vpop.trf.xlu0
    %v634 = vpack.c.bf16 %v536, %v532
    %v635 = vpack.c.bf16 %v546, %v542
    %v636 = vpack.c.bf16 %v557, %v555
    %v637 = vpack.c.bf16 %v561, %v559
    %v638 = vpack.c.bf16 %v569, %v567
    %v639 = vpack.c.bf16 %v573, %v571
    %v640 = vpack.c.bf16 %v581, %v579
    %v641 = vpack.c.bf16 %v585, %v583
    %v642 = vpack.c.bf16 %v619, %v618
    %v643 = vpack.c.bf16 %v621, %v620
    %v644 = vpack.c.bf16 %v623, %v622
    %v645 = vpack.c.bf16 %v625, %v624
    %vm646 = vcmask 130048
    %v648 = vsel %vm646, %v634, 0
    %v651 = vsel %vm646, %v635, 0
    %653 = vmatprep.subr.bf16.mxu0 0
    %654 = vmatpush1.bf16.msra.mxu0 %v642
    %655 = vmatprep.subr.bf16.mxu0 0
    %656 = vmatpush1.bf16.msra.mxu0 0
    %657 = vmatprep.subr.bf16.mxu0 0
    %658 = vmatpush1.bf16.msra.mxu0 0
    %659 = vmatprep.subr.bf16.mxu0 0
    %660 = vmatpush1.bf16.msra.mxu0 0
    %661 = vmatprep.subr.bf16.mxu0 0
    %662 = vmatpush1.bf16.msra.mxu0 0
    %663 = vmatprep.subr.bf16.mxu0 0
    %664 = vmatpush1.bf16.msra.mxu0 0
    %665 = vmatprep.subr.bf16.mxu0 0
    %666 = vmatpush1.bf16.msra.mxu0 0
    %667 = vmatprep.subr.bf16.mxu0 0
    %668 = vmatpush1.bf16.msra.mxu0 0
    %669 = vmatprep.subr.bf16.mxu0 0
    %670 = vmatpush1.bf16.msra.mxu0 0
    %671 = vmatprep.subr.bf16.mxu0 0
    %672 = vmatpush1.bf16.msra.mxu0 0
    %673 = vmatprep.subr.bf16.mxu0 0
    %674 = vmatpush1.bf16.msra.mxu0 0
    %675 = vmatprep.subr.bf16.mxu0 0
    %676 = vmatpush1.bf16.msra.mxu0 0
    %677 = vmatprep.subr.bf16.mxu0 0
    %678 = vmatpush1.bf16.msra.mxu0 0
    %679 = vmatprep.subr.bf16.mxu0 0
    %680 = vmatpush1.bf16.msra.mxu0 0
    %681 = vmatprep.subr.bf16.mxu0 0
    %682 = vmatpush1.bf16.msra.mxu0 0
    %683 = vmatprep.subr.bf16.mxu0 0
    %684 = vmatpush1.bf16.msra.mxu0 0
    %685 = vmatprep.mubr.bf16.mxu0 0
    %686 = vmatmul.mubr.bf16.gmra.mrb[0].mxu0 %v648
    %v687 = vpop.f32.mrb[0].mxu0
    %v688 = vadd.f32 0.0, %v687
    %v689 = vpop.f32.mrb[0].mxu0
    %v690 = vpop.f32.mrb[0].mxu0
    %v691 = vadd.f32 0.0, %v690
    %v692 = vpop.f32.mrb[0].mxu0
    %693 = vmatprep.mubr.bf16.mxu0 0
    %694 = vmatmul.mubr.bf16.gmra.mrb[0].mxu0 %v651
    %v695 = vpop.f32.mrb[0].mxu0
    %v696 = vadd.f32 0.0, %v695
    %v697 = vpop.f32.mrb[0].mxu0
    %v698 = vpop.f32.mrb[0].mxu0
    %v699 = vadd.f32 0.0, %v698
    %v700 = vpop.f32.mrb[0].mxu0
    %701 = vdwg.mxu0
    %v703 = vsel %vm646, %v636, 0
    %v706 = vsel %vm646, %v637, 0
    %708 = vmatprep.subr.bf16.mxu0 0
    %709 = vmatpush1.bf16.msra.mxu0 %v643
    %710 = vmatprep.subr.bf16.mxu0 0
    %711 = vmatpush1.bf16.msra.mxu0 0
    %712 = vmatprep.subr.bf16.mxu0 0
    %713 = vmatpush1.bf16.msra.mxu0 0
    %714 = vmatprep.subr.bf16.mxu0 0
    %715 = vmatpush1.bf16.msra.mxu0 0
    %716 = vmatprep.subr.bf16.mxu0 0
    %717 = vmatpush1.bf16.msra.mxu0 0
    %718 = vmatprep.subr.bf16.mxu0 0
    %719 = vmatpush1.bf16.msra.mxu0 0
    %720 = vmatprep.subr.bf16.mxu0 0
    %721 = vmatpush1.bf16.msra.mxu0 0
    %722 = vmatprep.subr.bf16.mxu0 0
    %723 = vmatpush1.bf16.msra.mxu0 0
    %724 = vmatprep.subr.bf16.mxu0 0
    %725 = vmatpush1.bf16.msra.mxu0 0
    %726 = vmatprep.subr.bf16.mxu0 0
    %727 = vmatpush1.bf16.msra.mxu0 0
    %728 = vmatprep.subr.bf16.mxu0 0
    %729 = vmatpush1.bf16.msra.mxu0 0
    %730 = vmatprep.subr.bf16.mxu0 0
    %731 = vmatpush1.bf16.msra.mxu0 0
    %732 = vmatprep.subr.bf16.mxu0 0
    %733 = vmatpush1.bf16.msra.mxu0 0
    %734 = vmatprep.subr.bf16.mxu0 0
    %735 = vmatpush1.bf16.msra.mxu0 0
    %736 = vmatprep.subr.bf16.mxu0 0
    %737 = vmatpush1.bf16.msra.mxu0 0
    %738 = vmatprep.subr.bf16.mxu0 0
    %739 = vmatpush1.bf16.msra.mxu0 0
    %740 = vmatprep.mubr.bf16.mxu0 0
    %741 = vmatmul.mubr.bf16.gmra.mrb[0].mxu0 %v703
    %v742 = vpop.f32.mrb[0].mxu0
    %v743 = vadd.f32 0.0, %v742
    %v744 = vpop.f32.mrb[0].mxu0
    %v745 = vpop.f32.mrb[0].mxu0
    %v746 = vadd.f32 0.0, %v745
    %v747 = vpop.f32.mrb[0].mxu0
    %748 = vmatprep.mubr.bf16.mxu0 0
    %749 = vmatmul.mubr.bf16.gmra.mrb[0].mxu0 %v706
    %v750 = vpop.f32.mrb[0].mxu0
    %v751 = vadd.f32 0.0, %v750
    %v752 = vpop.f32.mrb[0].mxu0
    %v753 = vpop.f32.mrb[0].mxu0
    %v754 = vadd.f32 0.0, %v753
    %v755 = vpop.f32.mrb[0].mxu0
    %756 = vdwg.mxu0
    %v758 = vsel %vm646, %v638, 0
    %v761 = vsel %vm646, %v639, 0
    %763 = vmatprep.subr.bf16.mxu0 0
    %764 = vmatpush1.bf16.msra.mxu0 %v644
    %765 = vmatprep.subr.bf16.mxu0 0
    %766 = vmatpush1.bf16.msra.mxu0 0
    %767 = vmatprep.subr.bf16.mxu0 0
    %768 = vmatpush1.bf16.msra.mxu0 0
    %769 = vmatprep.subr.bf16.mxu0 0
    %770 = vmatpush1.bf16.msra.mxu0 0
    %771 = vmatprep.subr.bf16.mxu0 0
    %772 = vmatpush1.bf16.msra.mxu0 0
    %773 = vmatprep.subr.bf16.mxu0 0
    %774 = vmatpush1.bf16.msra.mxu0 0
    %775 = vmatprep.subr.bf16.mxu0 0
    %776 = vmatpush1.bf16.msra.mxu0 0
    %777 = vmatprep.subr.bf16.mxu0 0
    %778 = vmatpush1.bf16.msra.mxu0 0
    %779 = vmatprep.subr.bf16.mxu0 0
    %780 = vmatpush1.bf16.msra.mxu0 0
    %781 = vmatprep.subr.bf16.mxu0 0
    %782 = vmatpush1.bf16.msra.mxu0 0
    %783 = vmatprep.subr.bf16.mxu0 0
    %784 = vmatpush1.bf16.msra.mxu0 0
    %785 = vmatprep.subr.bf16.mxu0 0
    %786 = vmatpush1.bf16.msra.mxu0 0
    %787 = vmatprep.subr.bf16.mxu0 0
    %788 = vmatpush1.bf16.msra.mxu0 0
    %789 = vmatprep.subr.bf16.mxu0 0
    %790 = vmatpush1.bf16.msra.mxu0 0
    %791 = vmatprep.subr.bf16.mxu0 0
    %792 = vmatpush1.bf16.msra.mxu0 0
    %793 = vmatprep.subr.bf16.mxu0 0
    %794 = vmatpush1.bf16.msra.mxu0 0
    %795 = vmatprep.mubr.bf16.mxu0 0
    %796 = vmatmul.mubr.bf16.gmra.mrb[0].mxu0 %v758
    %v797 = vpop.f32.mrb[0].mxu0
    %v798 = vadd.f32 0.0, %v797
    %v799 = vpop.f32.mrb[0].mxu0
    %v800 = vpop.f32.mrb[0].mxu0
    %v801 = vadd.f32 0.0, %v800
    %v802 = vpop.f32.mrb[0].mxu0
    %803 = vmatprep.mubr.bf16.mxu0 0
    %804 = vmatmul.mubr.bf16.gmra.mrb[0].mxu0 %v761
    %v805 = vpop.f32.mrb[0].mxu0
    %v806 = vadd.f32 0.0, %v805
    %v807 = vpop.f32.mrb[0].mxu0
    %v808 = vpop.f32.mrb[0].mxu0
    %v809 = vadd.f32 0.0, %v808
    %v810 = vpop.f32.mrb[0].mxu0
    %811 = vdwg.mxu0
    %v813 = vsel %vm646, %v640, 0
    %v816 = vsel %vm646, %v641, 0
    %818 = vmatprep.subr.bf16.mxu0 0
    %819 = vmatpush1.bf16.msra.mxu0 %v645
    %820 = vmatprep.subr.bf16.mxu0 0
    %821 = vmatpush1.bf16.msra.mxu0 0
    %822 = vmatprep.subr.bf16.mxu0 0
    %823 = vmatpush1.bf16.msra.mxu0 0
    %824 = vmatprep.subr.bf16.mxu0 0
    %825 = vmatpush1.bf16.msra.mxu0 0
    %826 = vmatprep.subr.bf16.mxu0 0
    %827 = vmatpush1.bf16.msra.mxu0 0
    %828 = vmatprep.subr.bf16.mxu0 0
    %829 = vmatpush1.bf16.msra.mxu0 0
    %830 = vmatprep.subr.bf16.mxu0 0
    %831 = vmatpush1.bf16.msra.mxu0 0
    %832 = vmatprep.subr.bf16.mxu0 0
    %833 = vmatpush1.bf16.msra.mxu0 0
    %834 = vmatprep.subr.bf16.mxu0 0
    %835 = vmatpush1.bf16.msra.mxu0 0
    %836 = vmatprep.subr.bf16.mxu0 0
    %837 = vmatpush1.bf16.msra.mxu0 0
    %838 = vmatprep.subr.bf16.mxu0 0
    %839 = vmatpush1.bf16.msra.mxu0 0
    %840 = vmatprep.subr.bf16.mxu0 0
    %841 = vmatpush1.bf16.msra.mxu0 0
    %842 = vmatprep.subr.bf16.mxu0 0
    %843 = vmatpush1.bf16.msra.mxu0 0
    %844 = vmatprep.subr.bf16.mxu0 0
    %845 = vmatpush1.bf16.msra.mxu0 0
    %846 = vmatprep.subr.bf16.mxu0 0
    %847 = vmatpush1.bf16.msra.mxu0 0
    %848 = vmatprep.subr.bf16.mxu0 0
    %849 = vmatpush1.bf16.msra.mxu0 0
    %850 = vmatprep.mubr.bf16.mxu0 0
    %851 = vmatmul.mubr.bf16.gmra.mrb[0].mxu0 %v813
    %v852 = vpop.f32.mrb[0].mxu0
    %v853 = vadd.f32 0.0, %v852
    %v854 = vpop.f32.mrb[0].mxu0
    %v855 = vpop.f32.mrb[0].mxu0
    %v856 = vadd.f32 0.0, %v855
    %v857 = vpop.f32.mrb[0].mxu0
    %858 = vmatprep.mubr.bf16.mxu0 0
    %859 = vmatmul.mubr.bf16.gmra.mrb[0].mxu0 %v816
    %v860 = vpop.f32.mrb[0].mxu0
    %v861 = vadd.f32 0.0, %v860
    %v862 = vpop.f32.mrb[0].mxu0
    %v863 = vpop.f32.mrb[0].mxu0
    %v864 = vadd.f32 0.0, %v863
    %v865 = vpop.f32.mrb[0].mxu0
    %866 = vdwg.mxu0
    %867 = vrot.lane.b32.xlu0 %v532, 16
    %v868 = vpop.permute.xlu0 %867
    %869 = vrot.lane.b32.xlu0 %v536, 16
    %v870 = vpop.permute.xlu0 %869
    %871 = vrot.lane.b32.xlu0 %v542, 16
    %v872 = vpop.permute.xlu0 %871
    %873 = vrot.lane.b32.xlu0 %v546, 16
    %v874 = vpop.permute.xlu0 %873
    %875 = vrot.lane.b32.xlu0 %v555, 16
    %v876 = vpop.permute.xlu0 %875
    %877 = vrot.lane.b32.xlu0 %v557, 16
    %v878 = vpop.permute.xlu0 %877
    %879 = vrot.lane.b32.xlu0 %v559, 16
    %v880 = vpop.permute.xlu0 %879
    %881 = vrot.lane.b32.xlu0 %v561, 16
    %v882 = vpop.permute.xlu0 %881
    %883 = vrot.lane.b32.xlu0 %v567, 16
    %v884 = vpop.permute.xlu0 %883
    %885 = vrot.lane.b32.xlu0 %v569, 16
    %v886 = vpop.permute.xlu0 %885
    %887 = vrot.lane.b32.xlu0 %v571, 16
    %v888 = vpop.permute.xlu0 %887
    %889 = vrot.lane.b32.xlu0 %v573, 16
    %v890 = vpop.permute.xlu0 %889
    %891 = vrot.lane.b32.xlu0 %v579, 16
    %v892 = vpop.permute.xlu0 %891
    %893 = vrot.lane.b32.xlu0 %v581, 16
    %v894 = vpop.permute.xlu0 %893
    %895 = vrot.lane.b32.xlu0 %v583, 16
    %v896 = vpop.permute.xlu0 %895
    %897 = vrot.lane.b32.xlu0 %v585, 16
    %v898 = vpop.permute.xlu0 %897
    %v915 = vsel %vm646, %v532, %v868
    %v916 = vsel %vm646, %v536, %v870
    %v917 = vsel %vm646, %v542, %v872
    %v918 = vsel %vm646, %v546, %v874
    %v919 = vsel %vm646, %v555, %v876
    %v920 = vsel %vm646, %v557, %v878
    %v921 = vsel %vm646, %v559, %v880
    %v922 = vsel %vm646, %v561, %v882
    %v923 = vsel %vm646, %v567, %v884
    %v924 = vsel %vm646, %v569, %v886
    %v925 = vsel %vm646, %v571, %v888
    %v926 = vsel %vm646, %v573, %v890
    %v927 = vsel %vm646, %v579, %v892
    %v928 = vsel %vm646, %v581, %v894
    %v929 = vsel %vm646, %v583, %v896
    %v930 = vsel %vm646, %v585, %v898
    %v931 = vsub.f32 %v915, %v618
    %v932 = vsub.f32 %v916, %v619
    %v933 = vsub.f32 %v917, %v618
    %v934 = vsub.f32 %v918, %v619
    %v935 = vsub.f32 %v919, %v620
    %v936 = vsub.f32 %v920, %v621
    %v937 = vsub.f32 %v921, %v620
    %v938 = vsub.f32 %v922, %v621
    %v939 = vsub.f32 %v923, %v622
    %v940 = vsub.f32 %v924, %v623
    %v941 = vsub.f32 %v925, %v622
    %v942 = vsub.f32 %v926, %v623
    %v943 = vsub.f32 %v927, %v624
    %v944 = vsub.f32 %v928, %v625
    %v945 = vsub.f32 %v929, %v624
    %v946 = vsub.f32 %v930, %v625
    %v947 = vand.u32 2147483647, %v931
    %v948 = vand.u32 2147483647, %v932
    %v949 = vand.u32 2147483647, %v933
    %v950 = vand.u32 2147483647, %v934
    %v951 = vand.u32 2147483647, %v935
    %v952 = vand.u32 2147483647, %v936
    %v953 = vand.u32 2147483647, %v937
    %v954 = vand.u32 2147483647, %v938
    %v955 = vand.u32 2147483647, %v939
    %v956 = vand.u32 2147483647, %v940
    %v957 = vand.u32 2147483647, %v941
    %v958 = vand.u32 2147483647, %v942
    %v959 = vand.u32 2147483647, %v943
    %v960 = vand.u32 2147483647, %v944
    %v961 = vand.u32 2147483647, %v945
    %v962 = vand.u32 2147483647, %v946
    %v963 = vmul.f32 %v688, 0.25
    %v964 = vmul.f32 %v691, 0.25
    %v965 = vmul.f32 %v696, 0.25
    %v966 = vmul.f32 %v699, 0.25
    %v967 = vmul.f32 %v743, 0.25
    %v968 = vmul.f32 %v746, 0.25
    %v969 = vmul.f32 %v751, 0.25
    %v970 = vmul.f32 %v754, 0.25
    %v971 = vmul.f32 %v798, 0.25
    %v972 = vmul.f32 %v801, 0.25
    %v973 = vmul.f32 %v806, 0.25
    %v974 = vmul.f32 %v809, 0.25
    %v975 = vmul.f32 %v853, 0.25
    %v976 = vmul.f32 %v856, 0.25
    %v977 = vmul.f32 %v861, 0.25
    %v978 = vmul.f32 %v864, 0.25
    %v979 = vmul.f32 %v947, 1.5
    %v980 = vmul.f32 %v948, 1.5
    %v981 = vmul.f32 %v949, 1.5
    %v982 = vmul.f32 %v950, 1.5
    %v983 = vmul.f32 %v951, 1.5
    %v984 = vmul.f32 %v952, 1.5
    %v985 = vmul.f32 %v953, 1.5
    %v986 = vmul.f32 %v954, 1.5
    %v987 = vmul.f32 %v955, 1.5
    %v988 = vmul.f32 %v956, 1.5
    %v989 = vmul.f32 %v957, 1.5
    %v990 = vmul.f32 %v958, 1.5
    %v991 = vmul.f32 %v959, 1.5
    %v992 = vmul.f32 %v960, 1.5
    %v993 = vmul.f32 %v961, 1.5
    %v994 = vmul.f32 %v962, 1.5
    %v995 = vadd.f32 %v963, %v979
    %v996 = vadd.f32 %v964, %v980
    %v997 = vadd.f32 %v965, %v981
    %v998 = vadd.f32 %v966, %v982
    %v999 = vadd.f32 %v967, %v983
    %v1000 = vadd.f32 %v968, %v984
    %v1001 = vadd.f32 %v969, %v985
    %v1002 = vadd.f32 %v970, %v986
    %v1003 = vadd.f32 %v971, %v987
    %v1004 = vadd.f32 %v972, %v988
    %v1005 = vadd.f32 %v973, %v989
    %v1006 = vadd.f32 %v974, %v990
    %v1007 = vadd.f32 %v975, %v991
    %v1008 = vadd.f32 %v976, %v992
    %v1009 = vadd.f32 %v977, %v993
    %v1010 = vadd.f32 %v978, %v994
    %v1011 = vld [vmem:[#allocation13] sm:$0xff]
    %v1012 = vld [vmem:[#allocation13 + $0x8] sm:$0xff]
    %v1013 = vld [vmem:[#allocation13 + $0x10] sm:$0xff]
    %v1014 = vld [vmem:[#allocation13 + $0x18] sm:$0xff]
    %v1015 = vadd.f32 %v995, %v1011
    %v1016 = vadd.f32 %v996, %v1012
    %v1017 = vadd.f32 %v997, %v1013
    %v1018 = vadd.f32 %v998, %v1014
    %v1019 = vadd.f32 %v999, %v1011
    %v1020 = vadd.f32 %v1000, %v1012
    %v1021 = vadd.f32 %v1001, %v1013
    %v1022 = vadd.f32 %v1002, %v1014
    %v1023 = vadd.f32 %v1003, %v1011
    %v1024 = vadd.f32 %v1004, %v1012
    %v1025 = vadd.f32 %v1005, %v1013
    %v1026 = vadd.f32 %v1006, %v1014
    %v1027 = vadd.f32 %v1007, %v1011
    %v1028 = vadd.f32 %v1008, %v1012
    %v1029 = vadd.f32 %v1009, %v1013
    %v1030 = vadd.f32 %v1010, %v1014
    %v1031 = vsel %vm151, %v1015, -inf
    %1032 = vmax.xlane.f32.xlu0 %v1031
    %v1033 = vpop.xlane.xlu0 %1032
    %v1034 = vsel %vm151, %v1016, -inf
    %1035 = vmax.xlane.f32.xlu0 %v1034
    %v1036 = vpop.xlane.xlu0 %1035
    %v1037 = vsel %vm151, %v1017, -inf
    %1038 = vmax.xlane.f32.xlu0 %v1037
    %v1039 = vpop.xlane.xlu0 %1038
    %v1040 = vsel %vm151, %v1018, -inf
    %1041 = vmax.xlane.f32.xlu0 %v1040
    %v1042 = vpop.xlane.xlu0 %1041
    %v1043 = vsel %vm151, %v1019, -inf
    %1044 = vmax.xlane.f32.xlu0 %v1043
    %v1045 = vpop.xlane.xlu0 %1044
    %v1046 = vsel %vm151, %v1020, -inf
    %1047 = vmax.xlane.f32.xlu0 %v1046
    %v1048 = vpop.xlane.xlu0 %1047
    %v1049 = vsel %vm151, %v1021, -inf
    %1050 = vmax.xlane.f32.xlu0 %v1049
    %v1051 = vpop.xlane.xlu0 %1050
    %v1052 = vsel %vm151, %v1022, -inf
    %1053 = vmax.xlane.f32.xlu0 %v1052
    %v1054 = vpop.xlane.xlu0 %1053
    %v1055 = vsel %vm151, %v1023, -inf
    %1056 = vmax.xlane.f32.xlu0 %v1055
    %v1057 = vpop.xlane.xlu0 %1056
    %v1058 = vsel %vm151, %v1024, -inf
    %1059 = vmax.xlane.f32.xlu0 %v1058
    %v1060 = vpop.xlane.xlu0 %1059
    %v1061 = vsel %vm151, %v1025, -inf
    %1062 = vmax.xlane.f32.xlu0 %v1061
    %v1063 = vpop.xlane.xlu0 %1062
    %v1064 = vsel %vm151, %v1026, -inf
    %1065 = vmax.xlane.f32.xlu0 %v1064
    %v1066 = vpop.xlane.xlu0 %1065
    %v1067 = vsel %vm151, %v1027, -inf
    %1068 = vmax.xlane.f32.xlu0 %v1067
    %v1069 = vpop.xlane.xlu0 %1068
    %v1070 = vsel %vm151, %v1028, -inf
    %1071 = vmax.xlane.f32.xlu0 %v1070
    %v1072 = vpop.xlane.xlu0 %1071
    %v1073 = vsel %vm151, %v1029, -inf
    %1074 = vmax.xlane.f32.xlu0 %v1073
    %v1075 = vpop.xlane.xlu0 %1074
    %v1076 = vsel %vm151, %v1030, -inf
    %1077 = vmax.xlane.f32.xlu0 %v1076
    %v1078 = vpop.xlane.xlu0 %1077
    %v1079 = vsub.f32 %v1015, %v1033
    %v1080 = vsub.f32 %v1016, %v1036
    %v1081 = vsub.f32 %v1017, %v1039
    %v1082 = vsub.f32 %v1018, %v1042
    %v1083 = vsub.f32 %v1019, %v1045
    %v1084 = vsub.f32 %v1020, %v1048
    %v1085 = vsub.f32 %v1021, %v1051
    %v1086 = vsub.f32 %v1022, %v1054
    %v1087 = vsub.f32 %v1023, %v1057
    %v1088 = vsub.f32 %v1024, %v1060
    %v1089 = vsub.f32 %v1025, %v1063
    %v1090 = vsub.f32 %v1026, %v1066
    %v1091 = vsub.f32 %v1027, %v1069
    %v1092 = vsub.f32 %v1028, %v1072
    %v1093 = vsub.f32 %v1029, %v1075
    %v1094 = vsub.f32 %v1030, %v1078
    %v1095 = vmul.f32 %v1079, 1.442695
    %v1096 = vpow.pop %v1095
    %v1097 = vmul.f32 %v1080, 1.442695
    %v1098 = vpow.pop %v1097
    %v1099 = vmul.f32 %v1081, 1.442695
    %v1100 = vpow.pop %v1099
    %v1101 = vmul.f32 %v1082, 1.442695
    %v1102 = vpow.pop %v1101
    %v1103 = vmul.f32 %v1083, 1.442695
    %v1104 = vpow.pop %v1103
    %v1105 = vmul.f32 %v1084, 1.442695
    %v1106 = vpow.pop %v1105
    %v1107 = vmul.f32 %v1085, 1.442695
    %v1108 = vpow.pop %v1107
    %v1109 = vmul.f32 %v1086, 1.442695
    %v1110 = vpow.pop %v1109
    %v1111 = vmul.f32 %v1087, 1.442695
    %v1112 = vpow.pop %v1111
    %v1113 = vmul.f32 %v1088, 1.442695
    %v1114 = vpow.pop %v1113
    %v1115 = vmul.f32 %v1089, 1.442695
    %v1116 = vpow.pop %v1115
    %v1117 = vmul.f32 %v1090, 1.442695
    %v1118 = vpow.pop %v1117
    %v1119 = vmul.f32 %v1091, 1.442695
    %v1120 = vpow.pop %v1119
    %v1121 = vmul.f32 %v1092, 1.442695
    %v1122 = vpow.pop %v1121
    %v1123 = vmul.f32 %v1093, 1.442695
    %v1124 = vpow.pop %v1123
    %v1125 = vmul.f32 %v1094, 1.442695
    %v1126 = vpow.pop %v1125
    %v1127 = vsel %vm151, %v1096, 0.0
    %1128 = vadd.xlane.f32.xlu0 %v1127
    %v1129 = vpop.xlane.xlu0 %1128
    %v1130 = vsel %vm151, %v1098, 0.0
    %1131 = vadd.xlane.f32.xlu0 %v1130
    %v1132 = vpop.xlane.xlu0 %1131
    %v1133 = vsel %vm151, %v1100, 0.0
    %1134 = vadd.xlane.f32.xlu0 %v1133
    %v1135 = vpop.xlane.xlu0 %1134
    %v1136 = vsel %vm151, %v1102, 0.0
    %1137 = vadd.xlane.f32.xlu0 %v1136
    %v1138 = vpop.xlane.xlu0 %1137
    %v1139 = vsel %vm151, %v1104, 0.0
    %1140 = vadd.xlane.f32.xlu0 %v1139
    %v1141 = vpop.xlane.xlu0 %1140
    %v1142 = vsel %vm151, %v1106, 0.0
    %1143 = vadd.xlane.f32.xlu0 %v1142
    %v1144 = vpop.xlane.xlu0 %1143
    %v1145 = vsel %vm151, %v1108, 0.0
    %1146 = vadd.xlane.f32.xlu0 %v1145
    %v1147 = vpop.xlane.xlu0 %1146
    %v1148 = vsel %vm151, %v1110, 0.0
    %1149 = vadd.xlane.f32.xlu0 %v1148
    %v1150 = vpop.xlane.xlu0 %1149
    %v1151 = vsel %vm151, %v1112, 0.0
    %1152 = vadd.xlane.f32.xlu0 %v1151
    %v1153 = vpop.xlane.xlu0 %1152
    %v1154 = vsel %vm151, %v1114, 0.0
    %1155 = vadd.xlane.f32.xlu0 %v1154
    %v1156 = vpop.xlane.xlu0 %1155
    %v1157 = vsel %vm151, %v1116, 0.0
    %1158 = vadd.xlane.f32.xlu0 %v1157
    %v1159 = vpop.xlane.xlu0 %1158
    %v1160 = vsel %vm151, %v1118, 0.0
    %1161 = vadd.xlane.f32.xlu0 %v1160
    %v1162 = vpop.xlane.xlu0 %1161
    %v1163 = vsel %vm151, %v1120, 0.0
    %1164 = vadd.xlane.f32.xlu0 %v1163
    %v1165 = vpop.xlane.xlu0 %1164
    %v1166 = vsel %vm151, %v1122, 0.0
    %1167 = vadd.xlane.f32.xlu0 %v1166
    %v1168 = vpop.xlane.xlu0 %1167
    %v1169 = vsel %vm151, %v1124, 0.0
    %1170 = vadd.xlane.f32.xlu0 %v1169
    %v1171 = vpop.xlane.xlu0 %1170
    %v1172 = vsel %vm151, %v1126, 0.0
    %1173 = vadd.xlane.f32.xlu0 %v1172
    %v1174 = vpop.xlane.xlu0 %1173
    %v1175 = vrcp.pop %v1129
    %v1176 = vrcp.pop %v1132
    %v1177 = vrcp.pop %v1135
    %v1178 = vrcp.pop %v1138
    %v1179 = vrcp.pop %v1141
    %v1180 = vrcp.pop %v1144
    %v1181 = vrcp.pop %v1147
    %v1182 = vrcp.pop %v1150
    %v1183 = vrcp.pop %v1153
    %v1184 = vrcp.pop %v1156
    %v1185 = vrcp.pop %v1159
    %v1186 = vrcp.pop %v1162
    %v1187 = vrcp.pop %v1165
    %v1188 = vrcp.pop %v1168
    %v1189 = vrcp.pop %v1171
    %v1190 = vrcp.pop %v1174
    %v1191 = vmul.f32 %v1096, %v1175
    %v1192 = vmul.f32 %v1098, %v1176
    %v1193 = vmul.f32 %v1100, %v1177
    %v1194 = vmul.f32 %v1102, %v1178
    %v1195 = vmul.f32 %v1104, %v1179
    %v1196 = vmul.f32 %v1106, %v1180
    %v1197 = vmul.f32 %v1108, %v1181
    %v1198 = vmul.f32 %v1110, %v1182
    %v1199 = vmul.f32 %v1112, %v1183
    %v1200 = vmul.f32 %v1114, %v1184
    %v1201 = vmul.f32 %v1116, %v1185
    %v1202 = vmul.f32 %v1118, %v1186
    %v1203 = vmul.f32 %v1120, %v1187
    %v1204 = vmul.f32 %v1122, %v1188
    %v1205 = vmul.f32 %v1124, %v1189
    %v1206 = vmul.f32 %v1126, %v1190
    %v1207 = vpack.c.bf16 %v538, %v534
    %v1208 = vpack.c.bf16 %v548, %v544
    %v1209 = vld [vmem:[#allocation14] sm:$0x3]
    %v1212 = vunpack.c.l.s4 1966171168
    %v1213 = vunpack.c.0.s8 %v1212
    %v1214 = vlaneseq
    %v1215 = vshrl.u32 %v1214, 7
    %v1216 = vsub.s32 %v1213, %v1215
    %v1217 = vrot.slane %v1209, %v1216
    %v1218 = vcombine.high %v1217, %v1217
    %v1219 = vunpack.i.l.s16 %v1217
    %v1220 = vunpack.i.h.s16 %v1217
    %v1221 = vunpack.i.l.s16 %v1218
    %v1222 = vunpack.i.h.s16 %v1218
    %v1223 = vpack.i.b16 %v1219, %v1219
    %v1224 = vpack.i.b16 %v1220, %v1220
    %v1225 = vpack.i.b16 %v1221, %v1221
    %v1226 = vpack.i.b16 %v1222, %v1222
    %v1227 = vlaneseq
    %v1228 = vshrl.u32 %v1227, 7
    %v1229 = vsub.s32 0, %v1228
    %v1230 = vrot.slane %v1223, %v1229
    %v1231 = vlaneseq
    %v1232 = vshrl.u32 %v1231, 7
    %v1233 = vsub.s32 0, %v1232
    %v1234 = vrot.slane %v1224, %v1233
    %v1235 = vlaneseq
    %v1236 = vshrl.u32 %v1235, 7
    %v1237 = vsub.s32 0, %v1236
    %v1238 = vrot.slane %v1225, %v1237
    %v1239 = vlaneseq
    %v1240 = vshrl.u32 %v1239, 7
    %v1241 = vsub.s32 0, %v1240
    %v1242 = vrot.slane %v1226, %v1241
    %v1244 = vpack.i.b16 %v1230, %v1230
    %v1246 = vlaneseq
    %v1247 = vshrl.u32 %v1246, 7
    %v1248 = vsub.s32 0, %v1247
    %v1249 = vrot.slane %v1244, %v1248
    %v1251 = vpack.i.b16 %v1234, %v1234
    %v1253 = vlaneseq
    %v1254 = vshrl.u32 %v1253, 7
    %v1255 = vsub.s32 0, %v1254
    %v1256 = vrot.slane %v1251, %v1255
    %v1258 = vpack.i.b16 %v1238, %v1238
    %v1260 = vlaneseq
    %v1261 = vshrl.u32 %v1260, 7
    %v1262 = vsub.s32 0, %v1261
    %v1263 = vrot.slane %v1258, %v1262
    %v1265 = vpack.i.b16 %v1242, %v1242
    %v1267 = vlaneseq
    %v1268 = vshrl.u32 %v1267, 7
    %v1269 = vsub.s32 0, %v1268
    %v1270 = vrot.slane %v1265, %v1269
    %v1271 = vmul.bf16 %v1207, %v1249
    %v1272 = vmul.bf16 %v1208, %v1249
    %v1273 = vmul.bf16 %v1207, %v1256
    %v1274 = vmul.bf16 %v1208, %v1256
    %v1275 = vmul.bf16 %v1207, %v1263
    %v1276 = vmul.bf16 %v1208, %v1263
    %v1277 = vmul.bf16 %v1207, %v1270
    %v1278 = vmul.bf16 %v1208, %v1270
    %v1279 = vpack.c.bf16 %v1192, %v1191
    %v1280 = vpack.c.bf16 %v1194, %v1193
    %v1281 = vpack.c.bf16 %v1196, %v1195
    %v1282 = vpack.c.bf16 %v1198, %v1197
    %v1283 = vpack.c.bf16 %v1200, %v1199
    %v1284 = vpack.c.bf16 %v1202, %v1201
    %v1285 = vpack.c.bf16 %v1204, %v1203
    %v1286 = vpack.c.bf16 %v1206, %v1205
    %v1288 = vsel %vm151, %v1279, 0
    %v1291 = vsel %vm151, %v1280, 0
    %1293 = vmatprep.subr.bf16.mxu0 0
    %1294 = vmatpush1.bf16.msra.mxu0 %v1271
    %1295 = vmatprep.subr.bf16.mxu0 0
    %1296 = vmatpush1.bf16.msra.mxu0 %v1272
    %1297 = vmatprep.subr.bf16.mxu0 0
    %1298 = vmatpush1.bf16.msra.mxu0 0
    %1299 = vmatprep.subr.bf16.mxu0 0
    %1300 = vmatpush1.bf16.msra.mxu0 0
    %1301 = vmatprep.subr.bf16.mxu0 0
    %1302 = vmatpush1.bf16.msra.mxu0 0
    %1303 = vmatprep.subr.bf16.mxu0 0
    %1304 = vmatpush1.bf16.msra.mxu0 0
    %1305 = vmatprep.subr.bf16.mxu0 0
    %1306 = vmatpush1.bf16.msra.mxu0 0
    %1307 = vmatprep.subr.bf16.mxu0 0
    %1308 = vmatpush1.bf16.msra.mxu0 0
    %1309 = vmatprep.subr.bf16.mxu0 0
    %1310 = vmatpush1.bf16.msra.mxu0 0
    %1311 = vmatprep.subr.bf16.mxu0 0
    %1312 = vmatpush1.bf16.msra.mxu0 0
    %1313 = vmatprep.subr.bf16.mxu0 0
    %1314 = vmatpush1.bf16.msra.mxu0 0
    %1315 = vmatprep.subr.bf16.mxu0 0
    %1316 = vmatpush1.bf16.msra.mxu0 0
    %1317 = vmatprep.subr.bf16.mxu0 0
    %1318 = vmatpush1.bf16.msra.mxu0 0
    %1319 = vmatprep.subr.bf16.mxu0 0
    %1320 = vmatpush1.bf16.msra.mxu0 0
    %1321 = vmatprep.subr.bf16.mxu0 0
    %1322 = vmatpush1.bf16.msra.mxu0 0
    %1323 = vmatprep.subr.bf16.mxu0 0
    %1324 = vmatpush1.bf16.msra.mxu0 0
    %1325 = vmatprep.mubr.bf16.mxu0 0
    %1326 = vmatmul.mubr.bf16.gmra.mrb[0].mxu0 %v1288
    %v1327 = vpop.f32.mrb[0].mxu0
    %v1328 = vadd.f32 0.0, %v1327
    %v1329 = vpop.f32.mrb[0].mxu0
    %v1330 = vpop.f32.mrb[0].mxu0
    %v1331 = vadd.f32 0.0, %v1330
    %v1332 = vpop.f32.mrb[0].mxu0
    %1333 = vmatprep.mubr.bf16.mxu0 0
    %1334 = vmatmul.mubr.bf16.gmra.mrb[0].mxu0 %v1291
    %v1335 = vpop.f32.mrb[0].mxu0
    %v1336 = vadd.f32 0.0, %v1335
    %v1337 = vpop.f32.mrb[0].mxu0
    %v1338 = vpop.f32.mrb[0].mxu0
    %v1339 = vadd.f32 0.0, %v1338
    %v1340 = vpop.f32.mrb[0].mxu0
    %1341 = vdwg.mxu0
    %v1343 = vsel %vm151, %v1281, 0
    %v1346 = vsel %vm151, %v1282, 0
    %1348 = vmatprep.subr.bf16.mxu0 0
    %1349 = vmatpush1.bf16.msra.mxu0 %v1273
    %1350 = vmatprep.subr.bf16.mxu0 0
    %1351 = vmatpush1.bf16.msra.mxu0 %v1274
    %1352 = vmatprep.subr.bf16.mxu0 0
    %1353 = vmatpush1.bf16.msra.mxu0 0
    %1354 = vmatprep.subr.bf16.mxu0 0
    %1355 = vmatpush1.bf16.msra.mxu0 0
    %1356 = vmatprep.subr.bf16.mxu0 0
    %1357 = vmatpush1.bf16.msra.mxu0 0
    %1358 = vmatprep.subr.bf16.mxu0 0
    %1359 = vmatpush1.bf16.msra.mxu0 0
    %1360 = vmatprep.subr.bf16.mxu0 0
    %1361 = vmatpush1.bf16.msra.mxu0 0
    %1362 = vmatprep.subr.bf16.mxu0 0
    %1363 = vmatpush1.bf16.msra.mxu0 0
    %1364 = vmatprep.subr.bf16.mxu0 0
    %1365 = vmatpush1.bf16.msra.mxu0 0
    %1366 = vmatprep.subr.bf16.mxu0 0
    %1367 = vmatpush1.bf16.msra.mxu0 0
    %1368 = vmatprep.subr.bf16.mxu0 0
    %1369 = vmatpush1.bf16.msra.mxu0 0
    %1370 = vmatprep.subr.bf16.mxu0 0
    %1371 = vmatpush1.bf16.msra.mxu0 0
    %1372 = vmatprep.subr.bf16.mxu0 0
    %1373 = vmatpush1.bf16.msra.mxu0 0
    %1374 = vmatprep.subr.bf16.mxu0 0
    %1375 = vmatpush1.bf16.msra.mxu0 0
    %1376 = vmatprep.subr.bf16.mxu0 0
    %1377 = vmatpush1.bf16.msra.mxu0 0
    %1378 = vmatprep.subr.bf16.mxu0 0
    %1379 = vmatpush1.bf16.msra.mxu0 0
    %1380 = vmatprep.mubr.bf16.mxu0 0
    %1381 = vmatmul.mubr.bf16.gmra.mrb[0].mxu0 %v1343
    %v1382 = vpop.f32.mrb[0].mxu0
    %v1383 = vadd.f32 0.0, %v1382
    %v1384 = vpop.f32.mrb[0].mxu0
    %v1385 = vpop.f32.mrb[0].mxu0
    %v1386 = vadd.f32 0.0, %v1385
    %v1387 = vpop.f32.mrb[0].mxu0
    %1388 = vmatprep.mubr.bf16.mxu0 0
    %1389 = vmatmul.mubr.bf16.gmra.mrb[0].mxu0 %v1346
    %v1390 = vpop.f32.mrb[0].mxu0
    %v1391 = vadd.f32 0.0, %v1390
    %v1392 = vpop.f32.mrb[0].mxu0
    %v1393 = vpop.f32.mrb[0].mxu0
    %v1394 = vadd.f32 0.0, %v1393
    %v1395 = vpop.f32.mrb[0].mxu0
    %1396 = vdwg.mxu0
    %v1398 = vsel %vm151, %v1283, 0
    %v1401 = vsel %vm151, %v1284, 0
    %1403 = vmatprep.subr.bf16.mxu0 0
    %1404 = vmatpush1.bf16.msra.mxu0 %v1275
    %1405 = vmatprep.subr.bf16.mxu0 0
    %1406 = vmatpush1.bf16.msra.mxu0 %v1276
    %1407 = vmatprep.subr.bf16.mxu0 0
    %1408 = vmatpush1.bf16.msra.mxu0 0
    %1409 = vmatprep.subr.bf16.mxu0 0
    %1410 = vmatpush1.bf16.msra.mxu0 0
    %1411 = vmatprep.subr.bf16.mxu0 0
    %1412 = vmatpush1.bf16.msra.mxu0 0
    %1413 = vmatprep.subr.bf16.mxu0 0
    %1414 = vmatpush1.bf16.msra.mxu0 0
    %1415 = vmatprep.subr.bf16.mxu0 0
    %1416 = vmatpush1.bf16.msra.mxu0 0
    %1417 = vmatprep.subr.bf16.mxu0 0
    %1418 = vmatpush1.bf16.msra.mxu0 0
    %1419 = vmatprep.subr.bf16.mxu0 0
    %1420 = vmatpush1.bf16.msra.mxu0 0
    %1421 = vmatprep.subr.bf16.mxu0 0
    %1422 = vmatpush1.bf16.msra.mxu0 0
    %1423 = vmatprep.subr.bf16.mxu0 0
    %1424 = vmatpush1.bf16.msra.mxu0 0
    %1425 = vmatprep.subr.bf16.mxu0 0
    %1426 = vmatpush1.bf16.msra.mxu0 0
    %1427 = vmatprep.subr.bf16.mxu0 0
    %1428 = vmatpush1.bf16.msra.mxu0 0
    %1429 = vmatprep.subr.bf16.mxu0 0
    %1430 = vmatpush1.bf16.msra.mxu0 0
    %1431 = vmatprep.subr.bf16.mxu0 0
    %1432 = vmatpush1.bf16.msra.mxu0 0
    %1433 = vmatprep.subr.bf16.mxu0 0
    %1434 = vmatpush1.bf16.msra.mxu0 0
    %1435 = vmatprep.mubr.bf16.mxu0 0
    %1436 = vmatmul.mubr.bf16.gmra.mrb[0].mxu0 %v1398
    %v1437 = vpop.f32.mrb[0].mxu0
    %v1438 = vadd.f32 0.0, %v1437
    %v1439 = vpop.f32.mrb[0].mxu0
    %v1440 = vpop.f32.mrb[0].mxu0
    %v1441 = vadd.f32 0.0, %v1440
    %v1442 = vpop.f32.mrb[0].mxu0
    %1443 = vmatprep.mubr.bf16.mxu0 0
    %1444 = vmatmul.mubr.bf16.gmra.mrb[0].mxu0 %v1401
    %v1445 = vpop.f32.mrb[0].mxu0
    %v1446 = vadd.f32 0.0, %v1445
    %v1447 = vpop.f32.mrb[0].mxu0
    %v1448 = vpop.f32.mrb[0].mxu0
    %v1449 = vadd.f32 0.0, %v1448
    %v1450 = vpop.f32.mrb[0].mxu0
    %1451 = vdwg.mxu0
    %v1453 = vsel %vm151, %v1285, 0
    %v1456 = vsel %vm151, %v1286, 0
    %1458 = vmatprep.subr.bf16.mxu0 0
    %1459 = vmatpush1.bf16.msra.mxu0 %v1277
    %1460 = vmatprep.subr.bf16.mxu0 0
    %1461 = vmatpush1.bf16.msra.mxu0 %v1278
    %1462 = vmatprep.subr.bf16.mxu0 0
    %1463 = vmatpush1.bf16.msra.mxu0 0
    %1464 = vmatprep.subr.bf16.mxu0 0
    %1465 = vmatpush1.bf16.msra.mxu0 0
    %1466 = vmatprep.subr.bf16.mxu0 0
    %1467 = vmatpush1.bf16.msra.mxu0 0
    %1468 = vmatprep.subr.bf16.mxu0 0
    %1469 = vmatpush1.bf16.msra.mxu0 0
    %1470 = vmatprep.subr.bf16.mxu0 0
    %1471 = vmatpush1.bf16.msra.mxu0 0
    %1472 = vmatprep.subr.bf16.mxu0 0
    %1473 = vmatpush1.bf16.msra.mxu0 0
    %1474 = vmatprep.subr.bf16.mxu0 0
    %1475 = vmatpush1.bf16.msra.mxu0 0
    %1476 = vmatprep.subr.bf16.mxu0 0
    %1477 = vmatpush1.bf16.msra.mxu0 0
    %1478 = vmatprep.subr.bf16.mxu0 0
    %1479 = vmatpush1.bf16.msra.mxu0 0
    %1480 = vmatprep.subr.bf16.mxu0 0
    %1481 = vmatpush1.bf16.msra.mxu0 0
    %1482 = vmatprep.subr.bf16.mxu0 0
    %1483 = vmatpush1.bf16.msra.mxu0 0
    %1484 = vmatprep.subr.bf16.mxu0 0
    %1485 = vmatpush1.bf16.msra.mxu0 0
    %1486 = vmatprep.subr.bf16.mxu0 0
    %1487 = vmatpush1.bf16.msra.mxu0 0
    %1488 = vmatprep.subr.bf16.mxu0 0
    %1489 = vmatpush1.bf16.msra.mxu0 0
    %1490 = vmatprep.mubr.bf16.mxu0 0
    %1491 = vmatmul.mubr.bf16.gmra.mrb[0].mxu0 %v1453
    %v1492 = vpop.f32.mrb[0].mxu0
    %v1493 = vadd.f32 0.0, %v1492
    %v1494 = vpop.f32.mrb[0].mxu0
    %v1495 = vpop.f32.mrb[0].mxu0
    %v1496 = vadd.f32 0.0, %v1495
    %v1497 = vpop.f32.mrb[0].mxu0
    %1498 = vmatprep.mubr.bf16.mxu0 0
    %1499 = vmatmul.mubr.bf16.gmra.mrb[0].mxu0 %v1456
    %v1500 = vpop.f32.mrb[0].mxu0
    %v1501 = vadd.f32 0.0, %v1500
    %v1502 = vpop.f32.mrb[0].mxu0
    %v1503 = vpop.f32.mrb[0].mxu0
    %v1504 = vadd.f32 0.0, %v1503
    %v1505 = vpop.f32.mrb[0].mxu0
    %1506 = vdwg.mxu0
    %v1507 = vsel %vm490, %v1328, 0.0
    %v1508 = vsel %vm490, %v1383, 0.0
    %v1509 = vadd.f32 %v1507, %v1508
    %v1510 = vsel %vm490, %v1438, 0.0
    %v1511 = vadd.f32 %v1509, %v1510
    %v1512 = vsel %vm490, %v1493, 0.0
    %v1513 = vadd.f32 %v1511, %v1512
    %v1514 = vsel %vm490, %v1331, 0.0
    %v1515 = vsel %vm490, %v1386, 0.0
    %v1516 = vadd.f32 %v1514, %v1515
    %v1517 = vsel %vm490, %v1441, 0.0
    %v1518 = vadd.f32 %v1516, %v1517
    %v1519 = vsel %vm490, %v1496, 0.0
    %v1520 = vadd.f32 %v1518, %v1519
    %v1521 = vsel %vm490, %v1336, 0.0
    %v1522 = vsel %vm490, %v1391, 0.0
    %v1523 = vadd.f32 %v1521, %v1522
    %v1524 = vsel %vm490, %v1446, 0.0
    %v1525 = vadd.f32 %v1523, %v1524
    %v1526 = vsel %vm490, %v1501, 0.0
    %v1527 = vadd.f32 %v1525, %v1526
    %v1528 = vsel %vm490, %v1339, 0.0
    %v1529 = vsel %vm490, %v1394, 0.0
    %v1530 = vadd.f32 %v1528, %v1529
    %v1531 = vsel %vm490, %v1449, 0.0
    %v1532 = vadd.f32 %v1530, %v1531
    %v1533 = vsel %vm490, %v1504, 0.0
    %v1534 = vadd.f32 %v1532, %v1533
    %v1535 = vpack.c.bf16 %v1520, %v1513
    %v1536 = vpack.c.bf16 %v1534, %v1527
    %v1537 = vld [vmem:[%s9] sm:$0xf]
    %v1538 = vld [vmem:[%s9 + $0x4] sm:$0xf]
    %v1539 = vld [vmem:[%s9 + $0x8] sm:$0xf]
    %v1540 = vld [vmem:[%s9 + $0xc] sm:$0xf]
    %v1541 = vld [vmem:[%s9 + $0x10] sm:$0xf]
    %v1542 = vld [vmem:[%s9 + $0x14] sm:$0xf]
    %v1543 = vld [vmem:[%s9 + $0x18] sm:$0xf]
    %v1544 = vld [vmem:[%s9 + $0x1c] sm:$0xf]
    %v1545 = vld [vmem:[%s10] sm:$0x1]
    %v1547 = vlaneseq
    %v1548 = vshrl.u32 %v1547, 7
    %v1549 = vsub.s32 0, %v1548
    %v1550 = vrot.slane %v1545, %v1549
    %v1560 = vunpack.c.l.b16 %v1537
    %v1561 = vunpack.c.l.b16 %v1538
    %v1562 = vunpack.c.l.b16 %v1539
    %v1563 = vunpack.c.l.b16 %v1540
    %v1564 = vunpack.c.l.b16 %v1541
    %v1565 = vunpack.c.l.b16 %v1542
    %v1566 = vunpack.c.l.b16 %v1543
    %v1567 = vunpack.c.l.b16 %v1544
    %v1568 = vpack.c.b16 %v1561, %v1560
    %v1569 = vpack.c.b16 %v1563, %v1562
    %v1570 = vpack.c.b16 %v1565, %v1564
    %v1571 = vpack.c.b16 %v1567, %v1566
    %v1577 = vsel %vm490, %v1535, 0
    %v1580 = vsel %vm490, %v1536, 0
    %1582 = vmatprep.subr.bf16.mxu0 0
    %1583 = vmatpush1.bf16.msra.mxu0 %v1568
    %1584 = vmatprep.subr.bf16.mxu0 0
    %1585 = vmatpush1.bf16.msra.mxu0 %v1569
    %1586 = vmatprep.subr.bf16.mxu0 0
    %1587 = vmatpush1.bf16.msra.mxu0 %v1570
    %1588 = vmatprep.subr.bf16.mxu0 0
    %1589 = vmatpush1.bf16.msra.mxu0 %v1571
    %1590 = vmatprep.subr.bf16.mxu0 0
    %1591 = vmatpush1.bf16.msra.mxu0 0
    %1592 = vmatprep.subr.bf16.mxu0 0
    %1593 = vmatpush1.bf16.msra.mxu0 0
    %1594 = vmatprep.subr.bf16.mxu0 0
    %1595 = vmatpush1.bf16.msra.mxu0 0
    %1596 = vmatprep.subr.bf16.mxu0 0
    %1597 = vmatpush1.bf16.msra.mxu0 0
    %1598 = vmatprep.subr.bf16.mxu0 0
    %1599 = vmatpush1.bf16.msra.mxu0 0
    %1600 = vmatprep.subr.bf16.mxu0 0
    %1601 = vmatpush1.bf16.msra.mxu0 0
    %1602 = vmatprep.subr.bf16.mxu0 0
    %1603 = vmatpush1.bf16.msra.mxu0 0
    %1604 = vmatprep.subr.bf16.mxu0 0
    %1605 = vmatpush1.bf16.msra.mxu0 0
    %1606 = vmatprep.subr.bf16.mxu0 0
    %1607 = vmatpush1.bf16.msra.mxu0 0
    %1608 = vmatprep.subr.bf16.mxu0 0
    %1609 = vmatpush1.bf16.msra.mxu0 0
    %1610 = vmatprep.subr.bf16.mxu0 0
    %1611 = vmatpush1.bf16.msra.mxu0 0
    %1612 = vmatprep.subr.bf16.mxu0 0
    %1613 = vmatpush1.bf16.msra.mxu0 0
    %1614 = vmatprep.mubr.bf16.mxu0 0
    %1615 = vmatmul.mubr.bf16.gmra.mrb[0].mxu0 %v1577
    %v1616 = vpop.f32.mrb[0].mxu0
    %v1617 = vadd.f32 %v1550, %v1616
    %v1618 = vpop.f32.mrb[0].mxu0
    %v1619 = vpop.f32.mrb[0].mxu0
    %v1620 = vadd.f32 %v1550, %v1619
    %v1621 = vpop.f32.mrb[0].mxu0
    %1622 = vmatprep.mubr.bf16.mxu0 0
    %1623 = vmatmul.mubr.bf16.gmra.mrb[0].mxu0 %v1580
    %v1624 = vpop.f32.mrb[0].mxu0
    %v1625 = vadd.f32 %v1550, %v1624
    %v1626 = vpop.f32.mrb[0].mxu0
    %v1627 = vpop.f32.mrb[0].mxu0
    %v1628 = vadd.f32 %v1550, %v1627
    %v1629 = vpop.f32.mrb[0].mxu0
    %1630 = vdwg.mxu0
    %v1631 = vmax.f32 %v1617, -1.0
    %v1632 = vmax.f32 %v1620, -1.0
    %v1633 = vmax.f32 %v1625, -1.0
    %v1634 = vmax.f32 %v1628, -1.0
    %v1635 = vmin.f32 %v1631, 1.0
    %v1636 = vmin.f32 %v1632, 1.0
    %v1637 = vmin.f32 %v1633, 1.0
    %v1638 = vmin.f32 %v1634, 1.0
    %1639 = vst [vmem:[#allocation16] sm:$0xff] %v1635
    %1640 = vst [vmem:[#allocation16 + $0x8] sm:$0xff] %v1636
    %1641 = vst [vmem:[#allocation16 + $0x10] sm:$0xff] %v1637
    %1642 = vst [vmem:[#allocation16 + $0x18] sm:$0xff] %v1638
    // Predicated region
    $region78: #{tpu_custom_call.1} parent=1 // pred_check
      _
    $region79: #{tpu_custom_call.1} parent=1 // pred_check_branch
      %1644 = sbr.rel (0) target = $region81
    $region80: #{tpu_custom_call.1} parent=1 // pred_region
      %s1646 = ssub.s32 512, 512
      %1647 = vsyncadd [#allocation4], %s1646
      %s1648 = sshll.u32 [#allocation16], 4
      %s1649 = int_to_ptr.vmem [resolvable:$true] %s1648
      %1654 = dma.vmem_to_hbm [thread:$0]  %s1649, 512, %s11, [#allocation4], 128, 128, 8
    $region81: #{tpu_custom_call.1} parent=1 // pred_fallthru
      _
    // Predicated region
    $region82: #{tpu_custom_call.1} parent=1 // pred_check
      _
    $region83: #{tpu_custom_call.1} parent=1 // pred_check_branch
      %1656 = sbr.rel (0) target = $region85
    $region84: #{tpu_custom_call.1} parent=1 // pred_region
      %1657 = dma.done [#allocation4], 512
    $region85: #{tpu_custom_call.1} parent=1 // pred_fallthru
      _
    %1658 = vsyncpa [#allocation3], 1
    %1659 = vsyncpa [#allocation6], 1
    %1660 = vsyncpa [#allocation9], 1
    %1661 = vsyncpa [#allocation12], 1
    %1662 = vsyncpa [#allocation15], 1
    %1663 = vsyncpa [#allocation4], 1

</llo_original>
